<compile_context>
chip_gen: v5e
topology: v5e:2x2
jax: 0.10.0
libtpu: 0.0.40
codegen_flags: <defaults>
</compile_context>

<pallas_src>
import numpy as np
import jax
import jax.numpy as jnp
from jax.experimental import pallas as pl
from jax.experimental.pallas import tpu as pltpu

CLASS_NUM = 4  # fixed in the PyTorch module


# ----------------------------------------------------------------------------
# Pallas kernel: full forward pass for one batch tile (BT rows).
#   x_ref   : (T*BT, D)       time-major rows (row = t*BT + local_b), f32
#   wih_ref : (D, 4*NB*H)     block-diagonal input->gates weights, bf16
#   whh_ref : (NB*H, 4*NB*H)  block-diagonal hidden->gates weights, bf16
#   b_ref   : (1, 4*NB*H)     combined bias (b_ih + b_hh), f32
#   fcw_ref : (NB*H, C)       fcn1.weight.T (branch-contiguous rows), f32
#   fcb_ref : (1, C)          fcn1.bias, f32
#   out_ref : (BT, C)
#   xg_ref  : (T*BT, 4*NB*H)  VMEM scratch for the hoisted projection, f32
# Gate order follows PyTorch: i, f, g, o (each NB*H = 128 lanes wide).
# ----------------------------------------------------------------------------
def action_net_kernel(x_ref, wih_ref, whh_ref, b_ref, fcw_ref, fcb_ref,
                      out_ref, xg_ref):
    TB, D = x_ref.shape
    HN, G = whh_ref.shape          # HN = NB*H (=128), G = 4*NB*H (=512)
    BT, C = out_ref.shape
    T = TB // BT

    # (1) Hoisted input projection: every branch, gate and time step in ONE
    #     bf16 MXU matmul (off the serial recurrence path), f32 accumulation.
    #     Result lands in VMEM scratch so the unrolled loop loads only
    #     (BT, G) = 4 vregs per step instead of keeping it all live.
    xg_ref[...] = (
        jnp.dot(x_ref[...].astype(jnp.bfloat16), wih_ref[...],
                preferred_element_type=jnp.float32)
        + b_ref[...])

    h = jnp.zeros((BT, HN), dtype=jnp.float32)
    c = jnp.zeros((BT, HN), dtype=jnp.float32)

    def sigm(v):
        # Single-EUP-op sigmoid: 0.5*(tanh(x/2)+1), avoids exp + divide.
        return 0.5 * jnp.tanh(0.5 * v) + 0.5

    # (2) Fused recurrence over all 4 branches, fully unrolled (T is static).
    #     Per step: one (BT,128)x(128,512) bf16 matmul + lane-aligned gate
    #     slices.  The per-step xg slice starts at a multiple of 8 rows, so it
    #     is a whole-sublane-tile load.
    # TODO(synk): if the bundle dump shows the per-step Whh push on the
    # critical path, hold it stationary via pltpu.matmul_push_rhs /
    # matmul_acc_lhs / matmul_pop across the 8 unrolled steps.
    for t in range(T):
        gates = xg_ref[t * BT:(t + 1) * BT, :] + jnp.dot(
            h.astype(jnp.bfloat16), whh_ref[...],
            preferred_element_type=jnp.float32)                     # (BT, G)
        i_g = sigm(gates[:, 0 * HN:1 * HN])
        f_g = sigm(gates[:, 1 * HN:2 * HN])
        g_g = jnp.tanh(gates[:, 2 * HN:3 * HN])
        o_g = sigm(gates[:, 3 * HN:4 * HN])
        c = f_g * c + i_g * g_g
        h = o_g * jnp.tanh(c)

    # (3) Final FC over the concatenated (BT, NB*H) hidden state (kept f32;
    #     tiny).  C=4 < 128 is a masked partial store — negligible here; pad C
    #     only if a profile of the gridded kernel shows it mattering.
    out = jnp.dot(h, fcw_ref[...], preferred_element_type=jnp.float32) \
        + fcb_ref[...]
    out_ref[...] = out.astype(out_ref.dtype)


# ----------------------------------------------------------------------------
# Parameter creation (PyTorch layout) and repacking into the fused layout.
# ----------------------------------------------------------------------------
def make_params(key, input_dim, hidden_dim, class_num=CLASS_NUM):
    S = input_dim // class_num
    H = hidden_dim
    bound = 1.0 / np.sqrt(H)
    ks = jax.random.split(key, 4 * class_num + 2)
    lstm = []
    idx = 0
    for _ in range(class_num):
        w_ih = jax.random.uniform(ks[idx], (4 * H, S), jnp.float32, -bound, bound); idx += 1
        w_hh = jax.random.uniform(ks[idx], (4 * H, H), jnp.float32, -bound, bound); idx += 1
        b_ih = jax.random.uniform(ks[idx], (4 * H,), jnp.float32, -bound, bound); idx += 1
        b_hh = jax.random.uniform(ks[idx], (4 * H,), jnp.float32, -bound, bound); idx += 1
        lstm.append((w_ih, w_hh, b_ih, b_hh))
    fb = 1.0 / np.sqrt(class_num * H)
    fc_w = jax.random.uniform(ks[idx], (class_num, class_num * H), jnp.float32, -fb, fb); idx += 1
    fc_b = jax.random.uniform(ks[idx], (class_num,), jnp.float32, -fb, fb)
    return lstm, fc_w, fc_b


def pack_params(lstm, fc_w, fc_b, class_num=CLASS_NUM):
    """Repack PyTorch-layout LSTM/FC params into the fused block-diagonal,
    gate-major layout used by the kernel.  Matmul weights are stored bf16
    (MXU inputs); biases / FC stay f32."""
    S = lstm[0][0].shape[1]
    H = lstm[0][1].shape[1]
    NB = class_num
    HN = NB * H            # fused hidden width (= 128 for H=32)
    G = 4 * HN             # fused gate width   (= 512)
    D = NB * S             # original feature dim

    wih_bd = np.zeros((D, G), np.float32)
    whh_bd = np.zeros((HN, G), np.float32)
    b_all = np.zeros((1, G), np.float32)
    for k, (w_ih, w_hh, b_ih, b_hh) in enumerate(lstm):
        w_ih = np.asarray(w_ih)   # (4H, S) rows packed [i; f; g; o]
        w_hh = np.asarray(w_hh)   # (4H, H)
        b = np.asarray(b_ih) + np.asarray(b_hh)
        for g in range(4):
            col = g * HN + k * H
            wih_bd[k * S:(k + 1) * S, col:col + H] = w_ih[g * H:(g + 1) * H, :].T
            whh_bd[k * H:(k + 1) * H, col:col + H] = w_hh[g * H:(g + 1) * H, :].T
            b_all[0, col:col + H] = b[g * H:(g + 1) * H]

    fcw = np.asarray(fc_w).T.astype(np.float32)          # (NB*H, C) — matches cat order
    fcb = np.asarray(fc_b).reshape(1, -1).astype(np.float32)
    return (jnp.asarray(wih_bd).astype(jnp.bfloat16),
            jnp.asarray(whh_bd).astype(jnp.bfloat16),
            jnp.asarray(b_all),
            jnp.asarray(fcw), jnp.asarray(fcb))


# ----------------------------------------------------------------------------
# Wrapper: pad the batch to a multiple of BT=8, regroup each batch tile
# time-major (rows t*BT + b), and grid over batch tiles.  Weights use constant
# index_maps so they remain VMEM-resident across grid steps; x/out tiles are
# pipelined.  dimension_semantics=("parallel",) shards tiles across both v7x
# TensorCores.
# TODO(synk): the time-major regroup of x stays a (tiny) host-side XLA op —
# an index_map can pick blocks but cannot permute rows within a block.
# ----------------------------------------------------------------------------
def action_net_pallas(x, packed, class_num=CLASS_NUM, batch_tile=8):
    wih_bd, whh_bd, b_all, fcw, fcb = packed
    B, T, D = x.shape
    HN, G = whh_bd.shape
    C = fcw.shape[-1]

    BT = batch_tile
    n_tiles = pl.cdiv(B, BT)
    B_pad = n_tiles * BT
    if B_pad != B:
        x = jnp.pad(x, ((0, B_pad - B), (0, 0), (0, 0)))

    # (B_pad, T, D) -> (n_tiles, T*BT, D): within each tile, rows are ordered
    # time-major so every time step owns a contiguous, sublane-aligned
    # (BT, D) row block.
    x_tiles = (x.reshape(n_tiles, BT, T, D)
                 .transpose(0, 2, 1, 3)
                 .reshape(n_tiles, T * BT, D))

    out = pl.pallas_call(
        action_net_kernel,
        out_shape=jax.ShapeDtypeStruct((B_pad, C), jnp.float32),
        grid=(n_tiles,),
        in_specs=[
            pl.BlockSpec((None, T * BT, D), lambda i: (i, 0, 0)),   # x tile
            pl.BlockSpec((D, G), lambda i: (0, 0)),                 # Wih (resident)
            pl.BlockSpec((HN, G), lambda i: (0, 0)),                # Whh (resident)
            pl.BlockSpec((1, G), lambda i: (0, 0)),                 # bias
            pl.BlockSpec((HN, C), lambda i: (0, 0)),                # FC weight
            pl.BlockSpec((1, C), lambda i: (0, 0)),                 # FC bias
        ],
        out_specs=pl.BlockSpec((BT, C), lambda i: (i, 0)),
        scratch_shapes=[pltpu.VMEM((T * BT, G), jnp.float32)],
        compiler_params=pltpu.CompilerParams(
            dimension_semantics=("parallel",)),
    )(x_tiles, wih_bd, whh_bd, b_all, fcw, fcb)
    return out[:B]


# ----------------------------------------------------------------------------
# Pure-JAX reference (mirrors the PyTorch forward exactly) for validation.
# ----------------------------------------------------------------------------
def reference_forward(x, lstm, fc_w, fc_b, H, class_num=CLASS_NUM):
    B, T, D = x.shape
    S = D // class_num
    hp = jax.lax.Precision.HIGHEST
    outs = []
    for k in range(class_num):
        w_ih, w_hh, b_ih, b_hh = lstm[k]
        xk = x[:, :, k * S:(k + 1) * S]
        h = jnp.zeros((B, H), jnp.float32)
        c = jnp.zeros((B, H), jnp.float32)
        for t in range(T):
            gates = (jnp.dot(xk[:, t], w_ih.T, precision=hp) + b_ih
                     + jnp.dot(h, w_hh.T, precision=hp) + b_hh)
            i, f, g, o = jnp.split(gates, 4, axis=-1)
            i = jax.nn.sigmoid(i)
            f = jax.nn.sigmoid(f)
            g = jnp.tanh(g)
            o = jax.nn.sigmoid(o)
            c = f * c + i * g
            h = o * jnp.tanh(c)
        outs.append(h)
    hcat = jnp.concatenate(outs, axis=1)
    return jnp.dot(hcat, fc_w.T, precision=hp) + fc_b


if __name__ == "__main__":
    # Small shapes consistent with the module:
    # time_length=8, input_dim=16 (sensorsize=4), hidden_dim=32, batch=2.
    time_length, input_dim, hidden_dim, batch = 8, 16, 32, 2

    key = jax.random.PRNGKey(0)
    k_param, k_x = jax.random.split(key)
    lstm, fc_w, fc_b = make_params(k_param, input_dim, hidden_dim)
    packed = pack_params(lstm, fc_w, fc_b)
    x = jax.random.normal(k_x, (batch, time_length, input_dim), jnp.float32)

    out = action_net_pallas(x, packed)
    out = jax.block_until_ready(out)

    ref = reference_forward(x, lstm, fc_w, fc_b, hidden_dim)
    # Tolerance: bf16 MXU weights (per the perf review) introduce O(1e-3)
    # rounding compounded over the 8-step recurrence, so 1e-3 is too tight for
    # the f32 reference.  2e-2 still catches any gate-order / block-diagonal
    # packing mistake, which produces O(0.1+) errors.
    np.testing.assert_allclose(np.asarray(out), np.asarray(ref),
                               rtol=2e-2, atol=2e-2)

    print("KERNEL_OK")
</pallas_src>

<mosaic_0001>
module attributes {stable_mosaic.version = 11 : i64} {
  func.func @action_net_kernel(%arg0: i32, %arg1: memref<1x64x16xf32, #tpu.memory_space<vmem>>, %arg2: memref<16x512xbf16, #tpu.memory_space<vmem>>, %arg3: memref<128x512xbf16, #tpu.memory_space<vmem>>, %arg4: memref<1x512xf32, #tpu.memory_space<vmem>>, %arg5: memref<128x4xf32, #tpu.memory_space<vmem>>, %arg6: memref<1x4xf32, #tpu.memory_space<vmem>>, %arg7: memref<8x4xf32, #tpu.memory_space<vmem>>, %arg8: memref<64x512xf32, #tpu.memory_space<vmem>>) attributes {dimension_semantics = [#tpu.dimension_semantics<parallel>], iteration_bounds = array<i64: 1>, scalar_prefetch = 0 : i64, scratch_operands = 1 : i64, tpu.core_type = #tpu.core_type<tc>, window_params = [{transform_indices = @transform_0, window_bounds = array<i64: 1, 64, 16>}, {pipeline_mode = #tpu.pipeline_mode<synchronous>, transform_indices = @transform_1, window_bounds = array<i64: 16, 512>}, {pipeline_mode = #tpu.pipeline_mode<synchronous>, transform_indices = @transform_2, window_bounds = array<i64: 128, 512>}, {pipeline_mode = #tpu.pipeline_mode<synchronous>, transform_indices = @transform_3, window_bounds = array<i64: 1, 512>}, {pipeline_mode = #tpu.pipeline_mode<synchronous>, transform_indices = @transform_4, window_bounds = array<i64: 128, 4>}, {pipeline_mode = #tpu.pipeline_mode<synchronous>, transform_indices = @transform_5, window_bounds = array<i64: 1, 4>}, {transform_indices = @transform_6, window_bounds = array<i64: 8, 4>}]} {
    %c0 = arith.constant 0 : index
    %c0_0 = arith.constant 0 : index
    %c0_1 = arith.constant 0 : index
    %0 = vector.load %arg1[%c0, %c0_0, %c0_1] : memref<1x64x16xf32, #tpu.memory_space<vmem>>, vector<1x64x16xf32>
    %1 = vector.shape_cast %0 : vector<1x64x16xf32> to vector<64x16xf32>
    %2 = arith.truncf %1 : vector<64x16xf32> to vector<64x16xbf16>
    %c0_2 = arith.constant 0 : index
    %c0_3 = arith.constant 0 : index
    %3 = vector.load %arg2[%c0_2, %c0_3] : memref<16x512xbf16, #tpu.memory_space<vmem>>, vector<16x512xbf16>
    %cst = arith.constant dense<0.000000e+00> : vector<64x512xf32>
    %4 = tpu.matmul %2, %3, %cst {dimension_numbers = #tpu.dot_dimension_numbers<[1], [0], [0], [1], [0, 0, 1, 1], [], []>} : vector<64x16xbf16>, vector<16x512xbf16>, vector<64x512xf32> -> vector<64x512xf32>
    %c0_4 = arith.constant 0 : index
    %c0_5 = arith.constant 0 : index
    %5 = vector.load %arg4[%c0_4, %c0_5] : memref<1x512xf32, #tpu.memory_space<vmem>>, vector<1x512xf32>
    %6 = vector.broadcast %5 : vector<1x512xf32> to vector<64x512xf32>
    %7 = arith.addf %4, %6 : vector<64x512xf32>
    %c0_6 = arith.constant 0 : index
    %c0_7 = arith.constant 0 : index
    %8 = vector.load %arg8[%c0_6, %c0_7] : memref<64x512xf32, #tpu.memory_space<vmem>>, vector<64x512xf32>
    tpu.vector_store %arg8[%c0_6, %c0_7], %7 {strides = array<i32>} : memref<64x512xf32, #tpu.memory_space<vmem>>, vector<64x512xf32>,
    %cst_8 = arith.constant 0.000000e+00 : f32
    %9 = vector.broadcast %cst_8 : f32 to vector<8x128xf32>
    %cst_9 = arith.constant 0.000000e+00 : f32
    %10 = vector.broadcast %cst_9 : f32 to vector<8x128xf32>
    %c0_10 = arith.constant 0 : index
    %c0_11 = arith.constant 0 : index
    %11 = vector.load %arg8[%c0_10, %c0_11] : memref<64x512xf32, #tpu.memory_space<vmem>>, vector<8x512xf32>
    %12 = arith.truncf %9 : vector<8x128xf32> to vector<8x128xbf16>
    %c0_12 = arith.constant 0 : index
    %c0_13 = arith.constant 0 : index
    %13 = vector.load %arg3[%c0_12, %c0_13] : memref<128x512xbf16, #tpu.memory_space<vmem>>, vector<128x512xbf16>
    %cst_14 = arith.constant dense<0.000000e+00> : vector<8x512xf32>
    %14 = tpu.matmul %12, %13, %cst_14 {dimension_numbers = #tpu.dot_dimension_numbers<[1], [0], [0], [1], [0, 0, 1, 1], [], []>} : vector<8x128xbf16>, vector<128x512xbf16>, vector<8x512xf32> -> vector<8x512xf32>
    %15 = arith.addf %11, %14 : vector<8x512xf32>
    %16 = vector.extract_strided_slice %15 {offsets = [0, 0], sizes = [8, 128], strides = [1, 1]} : vector<8x512xf32> to vector<8x128xf32>
    %cst_15 = arith.constant 5.000000e-01 : f32
    %17 = vector.broadcast %cst_15 : f32 to vector<8x128xf32>
    %18 = arith.mulf %17, %16 : vector<8x128xf32>
    %19 = math.tanh %18 : vector<8x128xf32>
    %cst_16 = arith.constant 5.000000e-01 : f32
    %20 = vector.broadcast %cst_16 : f32 to vector<8x128xf32>
    %21 = arith.mulf %20, %19 : vector<8x128xf32>
    %cst_17 = arith.constant 5.000000e-01 : f32
    %22 = vector.broadcast %cst_17 : f32 to vector<8x128xf32>
    %23 = arith.addf %21, %22 : vector<8x128xf32>
    %24 = vector.extract_strided_slice %15 {offsets = [0, 128], sizes = [8, 128], strides = [1, 1]} : vector<8x512xf32> to vector<8x128xf32>
    %cst_18 = arith.constant 5.000000e-01 : f32
    %25 = vector.broadcast %cst_18 : f32 to vector<8x128xf32>
    %26 = arith.mulf %25, %24 : vector<8x128xf32>
    %27 = math.tanh %26 : vector<8x128xf32>
    %cst_19 = arith.constant 5.000000e-01 : f32
    %28 = vector.broadcast %cst_19 : f32 to vector<8x128xf32>
    %29 = arith.mulf %28, %27 : vector<8x128xf32>
    %cst_20 = arith.constant 5.000000e-01 : f32
    %30 = vector.broadcast %cst_20 : f32 to vector<8x128xf32>
    %31 = arith.addf %29, %30 : vector<8x128xf32>
    %32 = vector.extract_strided_slice %15 {offsets = [0, 256], sizes = [8, 128], strides = [1, 1]} : vector<8x512xf32> to vector<8x128xf32>
    %33 = math.tanh %32 : vector<8x128xf32>
    %34 = vector.extract_strided_slice %15 {offsets = [0, 384], sizes = [8, 128], strides = [1, 1]} : vector<8x512xf32> to vector<8x128xf32>
    %cst_21 = arith.constant 5.000000e-01 : f32
    %35 = vector.broadcast %cst_21 : f32 to vector<8x128xf32>
    %36 = arith.mulf %35, %34 : vector<8x128xf32>
    %37 = math.tanh %36 : vector<8x128xf32>
    %cst_22 = arith.constant 5.000000e-01 : f32
    %38 = vector.broadcast %cst_22 : f32 to vector<8x128xf32>
    %39 = arith.mulf %38, %37 : vector<8x128xf32>
    %cst_23 = arith.constant 5.000000e-01 : f32
    %40 = vector.broadcast %cst_23 : f32 to vector<8x128xf32>
    %41 = arith.addf %39, %40 : vector<8x128xf32>
    %42 = arith.mulf %31, %10 : vector<8x128xf32>
    %43 = arith.mulf %23, %33 : vector<8x128xf32>
    %44 = arith.addf %42, %43 : vector<8x128xf32>
    %45 = math.tanh %44 : vector<8x128xf32>
    %46 = arith.mulf %41, %45 : vector<8x128xf32>
    %c8 = arith.constant 8 : index
    %c0_24 = arith.constant 0 : index
    %47 = vector.load %arg8[%c8, %c0_24] : memref<64x512xf32, #tpu.memory_space<vmem>>, vector<8x512xf32>
    %48 = arith.truncf %46 : vector<8x128xf32> to vector<8x128xbf16>
    %c0_25 = arith.constant 0 : index
    %c0_26 = arith.constant 0 : index
    %49 = vector.load %arg3[%c0_25, %c0_26] : memref<128x512xbf16, #tpu.memory_space<vmem>>, vector<128x512xbf16>
    %cst_27 = arith.constant dense<0.000000e+00> : vector<8x512xf32>
    %50 = tpu.matmul %48, %49, %cst_27 {dimension_numbers = #tpu.dot_dimension_numbers<[1], [0], [0], [1], [0, 0, 1, 1], [], []>} : vector<8x128xbf16>, vector<128x512xbf16>, vector<8x512xf32> -> vector<8x512xf32>
    %51 = arith.addf %47, %50 : vector<8x512xf32>
    %52 = vector.extract_strided_slice %51 {offsets = [0, 0], sizes = [8, 128], strides = [1, 1]} : vector<8x512xf32> to vector<8x128xf32>
    %cst_28 = arith.constant 5.000000e-01 : f32
    %53 = vector.broadcast %cst_28 : f32 to vector<8x128xf32>
    %54 = arith.mulf %53, %52 : vector<8x128xf32>
    %55 = math.tanh %54 : vector<8x128xf32>
    %cst_29 = arith.constant 5.000000e-01 : f32
    %56 = vector.broadcast %cst_29 : f32 to vector<8x128xf32>
    %57 = arith.mulf %56, %55 : vector<8x128xf32>
    %cst_30 = arith.constant 5.000000e-01 : f32
    %58 = vector.broadcast %cst_30 : f32 to vector<8x128xf32>
    %59 = arith.addf %57, %58 : vector<8x128xf32>
    %60 = vector.extract_strided_slice %51 {offsets = [0, 128], sizes = [8, 128], strides = [1, 1]} : vector<8x512xf32> to vector<8x128xf32>
    %cst_31 = arith.constant 5.000000e-01 : f32
    %61 = vector.broadcast %cst_31 : f32 to vector<8x128xf32>
    %62 = arith.mulf %61, %60 : vector<8x128xf32>
    %63 = math.tanh %62 : vector<8x128xf32>
    %cst_32 = arith.constant 5.000000e-01 : f32
    %64 = vector.broadcast %cst_32 : f32 to vector<8x128xf32>
    %65 = arith.mulf %64, %63 : vector<8x128xf32>
    %cst_33 = arith.constant 5.000000e-01 : f32
    %66 = vector.broadcast %cst_33 : f32 to vector<8x128xf32>
    %67 = arith.addf %65, %66 : vector<8x128xf32>
    %68 = vector.extract_strided_slice %51 {offsets = [0, 256], sizes = [8, 128], strides = [1, 1]} : vector<8x512xf32> to vector<8x128xf32>
    %69 = math.tanh %68 : vector<8x128xf32>
    %70 = vector.extract_strided_slice %51 {offsets = [0, 384], sizes = [8, 128], strides = [1, 1]} : vector<8x512xf32> to vector<8x128xf32>
    %cst_34 = arith.constant 5.000000e-01 : f32
    %71 = vector.broadcast %cst_34 : f32 to vector<8x128xf32>
    %72 = arith.mulf %71, %70 : vector<8x128xf32>
    %73 = math.tanh %72 : vector<8x128xf32>
    %cst_35 = arith.constant 5.000000e-01 : f32
    %74 = vector.broadcast %cst_35 : f32 to vector<8x128xf32>
    %75 = arith.mulf %74, %73 : vector<8x128xf32>
    %cst_36 = arith.constant 5.000000e-01 : f32
    %76 = vector.broadcast %cst_36 : f32 to vector<8x128xf32>
    %77 = arith.addf %75, %76 : vector<8x128xf32>
    %78 = arith.mulf %67, %44 : vector<8x128xf32>
    %79 = arith.mulf %59, %69 : vector<8x128xf32>
    %80 = arith.addf %78, %79 : vector<8x128xf32>
    %81 = math.tanh %80 : vector<8x128xf32>
    %82 = arith.mulf %77, %81 : vector<8x128xf32>
    %c16 = arith.constant 16 : index
    %c0_37 = arith.constant 0 : index
    %83 = vector.load %arg8[%c16, %c0_37] : memref<64x512xf32, #tpu.memory_space<vmem>>, vector<8x512xf32>
    %84 = arith.truncf %82 : vector<8x128xf32> to vector<8x128xbf16>
    %c0_38 = arith.constant 0 : index
    %c0_39 = arith.constant 0 : index
    %85 = vector.load %arg3[%c0_38, %c0_39] : memref<128x512xbf16, #tpu.memory_space<vmem>>, vector<128x512xbf16>
    %cst_40 = arith.constant dense<0.000000e+00> : vector<8x512xf32>
    %86 = tpu.matmul %84, %85, %cst_40 {dimension_numbers = #tpu.dot_dimension_numbers<[1], [0], [0], [1], [0, 0, 1, 1], [], []>} : vector<8x128xbf16>, vector<128x512xbf16>, vector<8x512xf32> -> vector<8x512xf32>
    %87 = arith.addf %83, %86 : vector<8x512xf32>
    %88 = vector.extract_strided_slice %87 {offsets = [0, 0], sizes = [8, 128], strides = [1, 1]} : vector<8x512xf32> to vector<8x128xf32>
    %cst_41 = arith.constant 5.000000e-01 : f32
    %89 = vector.broadcast %cst_41 : f32 to vector<8x128xf32>
    %90 = arith.mulf %89, %88 : vector<8x128xf32>
    %91 = math.tanh %90 : vector<8x128xf32>
    %cst_42 = arith.constant 5.000000e-01 : f32
    %92 = vector.broadcast %cst_42 : f32 to vector<8x128xf32>
    %93 = arith.mulf %92, %91 : vector<8x128xf32>
    %cst_43 = arith.constant 5.000000e-01 : f32
    %94 = vector.broadcast %cst_43 : f32 to vector<8x128xf32>
    %95 = arith.addf %93, %94 : vector<8x128xf32>
    %96 = vector.extract_strided_slice %87 {offsets = [0, 128], sizes = [8, 128], strides = [1, 1]} : vector<8x512xf32> to vector<8x128xf32>
    %cst_44 = arith.constant 5.000000e-01 : f32
    %97 = vector.broadcast %cst_44 : f32 to vector<8x128xf32>
    %98 = arith.mulf %97, %96 : vector<8x128xf32>
    %99 = math.tanh %98 : vector<8x128xf32>
    %cst_45 = arith.constant 5.000000e-01 : f32
    %100 = vector.broadcast %cst_45 : f32 to vector<8x128xf32>
    %101 = arith.mulf %100, %99 : vector<8x128xf32>
    %cst_46 = arith.constant 5.000000e-01 : f32
    %102 = vector.broadcast %cst_46 : f32 to vector<8x128xf32>
    %103 = arith.addf %101, %102 : vector<8x128xf32>
    %104 = vector.extract_strided_slice %87 {offsets = [0, 256], sizes = [8, 128], strides = [1, 1]} : vector<8x512xf32> to vector<8x128xf32>
    %105 = math.tanh %104 : vector<8x128xf32>
    %106 = vector.extract_strided_slice %87 {offsets = [0, 384], sizes = [8, 128], strides = [1, 1]} : vector<8x512xf32> to vector<8x128xf32>
    %cst_47 = arith.constant 5.000000e-01 : f32
    %107 = vector.broadcast %cst_47 : f32 to vector<8x128xf32>
    %108 = arith.mulf %107, %106 : vector<8x128xf32>
    %109 = math.tanh %108 : vector<8x128xf32>
    %cst_48 = arith.constant 5.000000e-01 : f32
    %110 = vector.broadcast %cst_48 : f32 to vector<8x128xf32>
    %111 = arith.mulf %110, %109 : vector<8x128xf32>
    %cst_49 = arith.constant 5.000000e-01 : f32
    %112 = vector.broadcast %cst_49 : f32 to vector<8x128xf32>
    %113 = arith.addf %111, %112 : vector<8x128xf32>
    %114 = arith.mulf %103, %80 : vector<8x128xf32>
    %115 = arith.mulf %95, %105 : vector<8x128xf32>
    %116 = arith.addf %114, %115 : vector<8x128xf32>
    %117 = math.tanh %116 : vector<8x128xf32>
    %118 = arith.mulf %113, %117 : vector<8x128xf32>
    %c24 = arith.constant 24 : index
    %c0_50 = arith.constant 0 : index
    %119 = vector.load %arg8[%c24, %c0_50] : memref<64x512xf32, #tpu.memory_space<vmem>>, vector<8x512xf32>
    %120 = arith.truncf %118 : vector<8x128xf32> to vector<8x128xbf16>
    %c0_51 = arith.constant 0 : index
    %c0_52 = arith.constant 0 : index
    %121 = vector.load %arg3[%c0_51, %c0_52] : memref<128x512xbf16, #tpu.memory_space<vmem>>, vector<128x512xbf16>
    %cst_53 = arith.constant dense<0.000000e+00> : vector<8x512xf32>
    %122 = tpu.matmul %120, %121, %cst_53 {dimension_numbers = #tpu.dot_dimension_numbers<[1], [0], [0], [1], [0, 0, 1, 1], [], []>} : vector<8x128xbf16>, vector<128x512xbf16>, vector<8x512xf32> -> vector<8x512xf32>
    %123 = arith.addf %119, %122 : vector<8x512xf32>
    %124 = vector.extract_strided_slice %123 {offsets = [0, 0], sizes = [8, 128], strides = [1, 1]} : vector<8x512xf32> to vector<8x128xf32>
    %cst_54 = arith.constant 5.000000e-01 : f32
    %125 = vector.broadcast %cst_54 : f32 to vector<8x128xf32>
    %126 = arith.mulf %125, %124 : vector<8x128xf32>
    %127 = math.tanh %126 : vector<8x128xf32>
    %cst_55 = arith.constant 5.000000e-01 : f32
    %128 = vector.broadcast %cst_55 : f32 to vector<8x128xf32>
    %129 = arith.mulf %128, %127 : vector<8x128xf32>
    %cst_56 = arith.constant 5.000000e-01 : f32
    %130 = vector.broadcast %cst_56 : f32 to vector<8x128xf32>
    %131 = arith.addf %129, %130 : vector<8x128xf32>
    %132 = vector.extract_strided_slice %123 {offsets = [0, 128], sizes = [8, 128], strides = [1, 1]} : vector<8x512xf32> to vector<8x128xf32>
    %cst_57 = arith.constant 5.000000e-01 : f32
    %133 = vector.broadcast %cst_57 : f32 to vector<8x128xf32>
    %134 = arith.mulf %133, %132 : vector<8x128xf32>
    %135 = math.tanh %134 : vector<8x128xf32>
    %cst_58 = arith.constant 5.000000e-01 : f32
    %136 = vector.broadcast %cst_58 : f32 to vector<8x128xf32>
    %137 = arith.mulf %136, %135 : vector<8x128xf32>
    %cst_59 = arith.constant 5.000000e-01 : f32
    %138 = vector.broadcast %cst_59 : f32 to vector<8x128xf32>
    %139 = arith.addf %137, %138 : vector<8x128xf32>
    %140 = vector.extract_strided_slice %123 {offsets = [0, 256], sizes = [8, 128], strides = [1, 1]} : vector<8x512xf32> to vector<8x128xf32>
    %141 = math.tanh %140 : vector<8x128xf32>
    %142 = vector.extract_strided_slice %123 {offsets = [0, 384], sizes = [8, 128], strides = [1, 1]} : vector<8x512xf32> to vector<8x128xf32>
    %cst_60 = arith.constant 5.000000e-01 : f32
    %143 = vector.broadcast %cst_60 : f32 to vector<8x128xf32>
    %144 = arith.mulf %143, %142 : vector<8x128xf32>
    %145 = math.tanh %144 : vector<8x128xf32>
    %cst_61 = arith.constant 5.000000e-01 : f32
    %146 = vector.broadcast %cst_61 : f32 to vector<8x128xf32>
    %147 = arith.mulf %146, %145 : vector<8x128xf32>
    %cst_62 = arith.constant 5.000000e-01 : f32
    %148 = vector.broadcast %cst_62 : f32 to vector<8x128xf32>
    %149 = arith.addf %147, %148 : vector<8x128xf32>
    %150 = arith.mulf %139, %116 : vector<8x128xf32>
    %151 = arith.mulf %131, %141 : vector<8x128xf32>
    %152 = arith.addf %150, %151 : vector<8x128xf32>
    %153 = math.tanh %152 : vector<8x128xf32>
    %154 = arith.mulf %149, %153 : vector<8x128xf32>
    %c32 = arith.constant 32 : index
    %c0_63 = arith.constant 0 : index
    %155 = vector.load %arg8[%c32, %c0_63] : memref<64x512xf32, #tpu.memory_space<vmem>>, vector<8x512xf32>
    %156 = arith.truncf %154 : vector<8x128xf32> to vector<8x128xbf16>
    %c0_64 = arith.constant 0 : index
    %c0_65 = arith.constant 0 : index
    %157 = vector.load %arg3[%c0_64, %c0_65] : memref<128x512xbf16, #tpu.memory_space<vmem>>, vector<128x512xbf16>
    %cst_66 = arith.constant dense<0.000000e+00> : vector<8x512xf32>
    %158 = tpu.matmul %156, %157, %cst_66 {dimension_numbers = #tpu.dot_dimension_numbers<[1], [0], [0], [1], [0, 0, 1, 1], [], []>} : vector<8x128xbf16>, vector<128x512xbf16>, vector<8x512xf32> -> vector<8x512xf32>
    %159 = arith.addf %155, %158 : vector<8x512xf32>
    %160 = vector.extract_strided_slice %159 {offsets = [0, 0], sizes = [8, 128], strides = [1, 1]} : vector<8x512xf32> to vector<8x128xf32>
    %cst_67 = arith.constant 5.000000e-01 : f32
    %161 = vector.broadcast %cst_67 : f32 to vector<8x128xf32>
    %162 = arith.mulf %161, %160 : vector<8x128xf32>
    %163 = math.tanh %162 : vector<8x128xf32>
    %cst_68 = arith.constant 5.000000e-01 : f32
    %164 = vector.broadcast %cst_68 : f32 to vector<8x128xf32>
    %165 = arith.mulf %164, %163 : vector<8x128xf32>
    %cst_69 = arith.constant 5.000000e-01 : f32
    %166 = vector.broadcast %cst_69 : f32 to vector<8x128xf32>
    %167 = arith.addf %165, %166 : vector<8x128xf32>
    %168 = vector.extract_strided_slice %159 {offsets = [0, 128], sizes = [8, 128], strides = [1, 1]} : vector<8x512xf32> to vector<8x128xf32>
    %cst_70 = arith.constant 5.000000e-01 : f32
    %169 = vector.broadcast %cst_70 : f32 to vector<8x128xf32>
    %170 = arith.mulf %169, %168 : vector<8x128xf32>
    %171 = math.tanh %170 : vector<8x128xf32>
    %cst_71 = arith.constant 5.000000e-01 : f32
    %172 = vector.broadcast %cst_71 : f32 to vector<8x128xf32>
    %173 = arith.mulf %172, %171 : vector<8x128xf32>
    %cst_72 = arith.constant 5.000000e-01 : f32
    %174 = vector.broadcast %cst_72 : f32 to vector<8x128xf32>
    %175 = arith.addf %173, %174 : vector<8x128xf32>
    %176 = vector.extract_strided_slice %159 {offsets = [0, 256], sizes = [8, 128], strides = [1, 1]} : vector<8x512xf32> to vector<8x128xf32>
    %177 = math.tanh %176 : vector<8x128xf32>
    %178 = vector.extract_strided_slice %159 {offsets = [0, 384], sizes = [8, 128], strides = [1, 1]} : vector<8x512xf32> to vector<8x128xf32>
    %cst_73 = arith.constant 5.000000e-01 : f32
    %179 = vector.broadcast %cst_73 : f32 to vector<8x128xf32>
    %180 = arith.mulf %179, %178 : vector<8x128xf32>
    %181 = math.tanh %180 : vector<8x128xf32>
    %cst_74 = arith.constant 5.000000e-01 : f32
    %182 = vector.broadcast %cst_74 : f32 to vector<8x128xf32>
    %183 = arith.mulf %182, %181 : vector<8x128xf32>
    %cst_75 = arith.constant 5.000000e-01 : f32
    %184 = vector.broadcast %cst_75 : f32 to vector<8x128xf32>
    %185 = arith.addf %183, %184 : vector<8x128xf32>
    %186 = arith.mulf %175, %152 : vector<8x128xf32>
    %187 = arith.mulf %167, %177 : vector<8x128xf32>
    %188 = arith.addf %186, %187 : vector<8x128xf32>
    %189 = math.tanh %188 : vector<8x128xf32>
    %190 = arith.mulf %185, %189 : vector<8x128xf32>
    %c40 = arith.constant 40 : index
    %c0_76 = arith.constant 0 : index
    %191 = vector.load %arg8[%c40, %c0_76] : memref<64x512xf32, #tpu.memory_space<vmem>>, vector<8x512xf32>
    %192 = arith.truncf %190 : vector<8x128xf32> to vector<8x128xbf16>
    %c0_77 = arith.constant 0 : index
    %c0_78 = arith.constant 0 : index
    %193 = vector.load %arg3[%c0_77, %c0_78] : memref<128x512xbf16, #tpu.memory_space<vmem>>, vector<128x512xbf16>
    %cst_79 = arith.constant dense<0.000000e+00> : vector<8x512xf32>
    %194 = tpu.matmul %192, %193, %cst_79 {dimension_numbers = #tpu.dot_dimension_numbers<[1], [0], [0], [1], [0, 0, 1, 1], [], []>} : vector<8x128xbf16>, vector<128x512xbf16>, vector<8x512xf32> -> vector<8x512xf32>
    %195 = arith.addf %191, %194 : vector<8x512xf32>
    %196 = vector.extract_strided_slice %195 {offsets = [0, 0], sizes = [8, 128], strides = [1, 1]} : vector<8x512xf32> to vector<8x128xf32>
    %cst_80 = arith.constant 5.000000e-01 : f32
    %197 = vector.broadcast %cst_80 : f32 to vector<8x128xf32>
    %198 = arith.mulf %197, %196 : vector<8x128xf32>
    %199 = math.tanh %198 : vector<8x128xf32>
    %cst_81 = arith.constant 5.000000e-01 : f32
    %200 = vector.broadcast %cst_81 : f32 to vector<8x128xf32>
    %201 = arith.mulf %200, %199 : vector<8x128xf32>
    %cst_82 = arith.constant 5.000000e-01 : f32
    %202 = vector.broadcast %cst_82 : f32 to vector<8x128xf32>
    %203 = arith.addf %201, %202 : vector<8x128xf32>
    %204 = vector.extract_strided_slice %195 {offsets = [0, 128], sizes = [8, 128], strides = [1, 1]} : vector<8x512xf32> to vector<8x128xf32>
    %cst_83 = arith.constant 5.000000e-01 : f32
    %205 = vector.broadcast %cst_83 : f32 to vector<8x128xf32>
    %206 = arith.mulf %205, %204 : vector<8x128xf32>
    %207 = math.tanh %206 : vector<8x128xf32>
    %cst_84 = arith.constant 5.000000e-01 : f32
    %208 = vector.broadcast %cst_84 : f32 to vector<8x128xf32>
    %209 = arith.mulf %208, %207 : vector<8x128xf32>
    %cst_85 = arith.constant 5.000000e-01 : f32
    %210 = vector.broadcast %cst_85 : f32 to vector<8x128xf32>
    %211 = arith.addf %209, %210 : vector<8x128xf32>
    %212 = vector.extract_strided_slice %195 {offsets = [0, 256], sizes = [8, 128], strides = [1, 1]} : vector<8x512xf32> to vector<8x128xf32>
    %213 = math.tanh %212 : vector<8x128xf32>
    %214 = vector.extract_strided_slice %195 {offsets = [0, 384], sizes = [8, 128], strides = [1, 1]} : vector<8x512xf32> to vector<8x128xf32>
    %cst_86 = arith.constant 5.000000e-01 : f32
    %215 = vector.broadcast %cst_86 : f32 to vector<8x128xf32>
    %216 = arith.mulf %215, %214 : vector<8x128xf32>
    %217 = math.tanh %216 : vector<8x128xf32>
    %cst_87 = arith.constant 5.000000e-01 : f32
    %218 = vector.broadcast %cst_87 : f32 to vector<8x128xf32>
    %219 = arith.mulf %218, %217 : vector<8x128xf32>
    %cst_88 = arith.constant 5.000000e-01 : f32
    %220 = vector.broadcast %cst_88 : f32 to vector<8x128xf32>
    %221 = arith.addf %219, %220 : vector<8x128xf32>
    %222 = arith.mulf %211, %188 : vector<8x128xf32>
    %223 = arith.mulf %203, %213 : vector<8x128xf32>
    %224 = arith.addf %222, %223 : vector<8x128xf32>
    %225 = math.tanh %224 : vector<8x128xf32>
    %226 = arith.mulf %221, %225 : vector<8x128xf32>
    %c48 = arith.constant 48 : index
    %c0_89 = arith.constant 0 : index
    %227 = vector.load %arg8[%c48, %c0_89] : memref<64x512xf32, #tpu.memory_space<vmem>>, vector<8x512xf32>
    %228 = arith.truncf %226 : vector<8x128xf32> to vector<8x128xbf16>
    %c0_90 = arith.constant 0 : index
    %c0_91 = arith.constant 0 : index
    %229 = vector.load %arg3[%c0_90, %c0_91] : memref<128x512xbf16, #tpu.memory_space<vmem>>, vector<128x512xbf16>
    %cst_92 = arith.constant dense<0.000000e+00> : vector<8x512xf32>
    %230 = tpu.matmul %228, %229, %cst_92 {dimension_numbers = #tpu.dot_dimension_numbers<[1], [0], [0], [1], [0, 0, 1, 1], [], []>} : vector<8x128xbf16>, vector<128x512xbf16>, vector<8x512xf32> -> vector<8x512xf32>
    %231 = arith.addf %227, %230 : vector<8x512xf32>
    %232 = vector.extract_strided_slice %231 {offsets = [0, 0], sizes = [8, 128], strides = [1, 1]} : vector<8x512xf32> to vector<8x128xf32>
    %cst_93 = arith.constant 5.000000e-01 : f32
    %233 = vector.broadcast %cst_93 : f32 to vector<8x128xf32>
    %234 = arith.mulf %233, %232 : vector<8x128xf32>
    %235 = math.tanh %234 : vector<8x128xf32>
    %cst_94 = arith.constant 5.000000e-01 : f32
    %236 = vector.broadcast %cst_94 : f32 to vector<8x128xf32>
    %237 = arith.mulf %236, %235 : vector<8x128xf32>
    %cst_95 = arith.constant 5.000000e-01 : f32
    %238 = vector.broadcast %cst_95 : f32 to vector<8x128xf32>
    %239 = arith.addf %237, %238 : vector<8x128xf32>
    %240 = vector.extract_strided_slice %231 {offsets = [0, 128], sizes = [8, 128], strides = [1, 1]} : vector<8x512xf32> to vector<8x128xf32>
    %cst_96 = arith.constant 5.000000e-01 : f32
    %241 = vector.broadcast %cst_96 : f32 to vector<8x128xf32>
    %242 = arith.mulf %241, %240 : vector<8x128xf32>
    %243 = math.tanh %242 : vector<8x128xf32>
    %cst_97 = arith.constant 5.000000e-01 : f32
    %244 = vector.broadcast %cst_97 : f32 to vector<8x128xf32>
    %245 = arith.mulf %244, %243 : vector<8x128xf32>
    %cst_98 = arith.constant 5.000000e-01 : f32
    %246 = vector.broadcast %cst_98 : f32 to vector<8x128xf32>
    %247 = arith.addf %245, %246 : vector<8x128xf32>
    %248 = vector.extract_strided_slice %231 {offsets = [0, 256], sizes = [8, 128], strides = [1, 1]} : vector<8x512xf32> to vector<8x128xf32>
    %249 = math.tanh %248 : vector<8x128xf32>
    %250 = vector.extract_strided_slice %231 {offsets = [0, 384], sizes = [8, 128], strides = [1, 1]} : vector<8x512xf32> to vector<8x128xf32>
    %cst_99 = arith.constant 5.000000e-01 : f32
    %251 = vector.broadcast %cst_99 : f32 to vector<8x128xf32>
    %252 = arith.mulf %251, %250 : vector<8x128xf32>
    %253 = math.tanh %252 : vector<8x128xf32>
    %cst_100 = arith.constant 5.000000e-01 : f32
    %254 = vector.broadcast %cst_100 : f32 to vector<8x128xf32>
    %255 = arith.mulf %254, %253 : vector<8x128xf32>
    %cst_101 = arith.constant 5.000000e-01 : f32
    %256 = vector.broadcast %cst_101 : f32 to vector<8x128xf32>
    %257 = arith.addf %255, %256 : vector<8x128xf32>
    %258 = arith.mulf %247, %224 : vector<8x128xf32>
    %259 = arith.mulf %239, %249 : vector<8x128xf32>
    %260 = arith.addf %258, %259 : vector<8x128xf32>
    %261 = math.tanh %260 : vector<8x128xf32>
    %262 = arith.mulf %257, %261 : vector<8x128xf32>
    %c56 = arith.constant 56 : index
    %c0_102 = arith.constant 0 : index
    %263 = vector.load %arg8[%c56, %c0_102] : memref<64x512xf32, #tpu.memory_space<vmem>>, vector<8x512xf32>
    %264 = arith.truncf %262 : vector<8x128xf32> to vector<8x128xbf16>
    %c0_103 = arith.constant 0 : index
    %c0_104 = arith.constant 0 : index
    %265 = vector.load %arg3[%c0_103, %c0_104] : memref<128x512xbf16, #tpu.memory_space<vmem>>, vector<128x512xbf16>
    %cst_105 = arith.constant dense<0.000000e+00> : vector<8x512xf32>
    %266 = tpu.matmul %264, %265, %cst_105 {dimension_numbers = #tpu.dot_dimension_numbers<[1], [0], [0], [1], [0, 0, 1, 1], [], []>} : vector<8x128xbf16>, vector<128x512xbf16>, vector<8x512xf32> -> vector<8x512xf32>
    %267 = arith.addf %263, %266 : vector<8x512xf32>
    %268 = vector.extract_strided_slice %267 {offsets = [0, 0], sizes = [8, 128], strides = [1, 1]} : vector<8x512xf32> to vector<8x128xf32>
    %cst_106 = arith.constant 5.000000e-01 : f32
    %269 = vector.broadcast %cst_106 : f32 to vector<8x128xf32>
    %270 = arith.mulf %269, %268 : vector<8x128xf32>
    %271 = math.tanh %270 : vector<8x128xf32>
    %cst_107 = arith.constant 5.000000e-01 : f32
    %272 = vector.broadcast %cst_107 : f32 to vector<8x128xf32>
    %273 = arith.mulf %272, %271 : vector<8x128xf32>
    %cst_108 = arith.constant 5.000000e-01 : f32
    %274 = vector.broadcast %cst_108 : f32 to vector<8x128xf32>
    %275 = arith.addf %273, %274 : vector<8x128xf32>
    %276 = vector.extract_strided_slice %267 {offsets = [0, 128], sizes = [8, 128], strides = [1, 1]} : vector<8x512xf32> to vector<8x128xf32>
    %cst_109 = arith.constant 5.000000e-01 : f32
    %277 = vector.broadcast %cst_109 : f32 to vector<8x128xf32>
    %278 = arith.mulf %277, %276 : vector<8x128xf32>
    %279 = math.tanh %278 : vector<8x128xf32>
    %cst_110 = arith.constant 5.000000e-01 : f32
    %280 = vector.broadcast %cst_110 : f32 to vector<8x128xf32>
    %281 = arith.mulf %280, %279 : vector<8x128xf32>
    %cst_111 = arith.constant 5.000000e-01 : f32
    %282 = vector.broadcast %cst_111 : f32 to vector<8x128xf32>
    %283 = arith.addf %281, %282 : vector<8x128xf32>
    %284 = vector.extract_strided_slice %267 {offsets = [0, 256], sizes = [8, 128], strides = [1, 1]} : vector<8x512xf32> to vector<8x128xf32>
    %285 = math.tanh %284 : vector<8x128xf32>
    %286 = vector.extract_strided_slice %267 {offsets = [0, 384], sizes = [8, 128], strides = [1, 1]} : vector<8x512xf32> to vector<8x128xf32>
    %cst_112 = arith.constant 5.000000e-01 : f32
    %287 = vector.broadcast %cst_112 : f32 to vector<8x128xf32>
    %288 = arith.mulf %287, %286 : vector<8x128xf32>
    %289 = math.tanh %288 : vector<8x128xf32>
    %cst_113 = arith.constant 5.000000e-01 : f32
    %290 = vector.broadcast %cst_113 : f32 to vector<8x128xf32>
    %291 = arith.mulf %290, %289 : vector<8x128xf32>
    %cst_114 = arith.constant 5.000000e-01 : f32
    %292 = vector.broadcast %cst_114 : f32 to vector<8x128xf32>
    %293 = arith.addf %291, %292 : vector<8x128xf32>
    %294 = arith.mulf %283, %260 : vector<8x128xf32>
    %295 = arith.mulf %275, %285 : vector<8x128xf32>
    %296 = arith.addf %294, %295 : vector<8x128xf32>
    %297 = math.tanh %296 : vector<8x128xf32>
    %298 = arith.mulf %293, %297 : vector<8x128xf32>
    %c0_115 = arith.constant 0 : index
    %c0_116 = arith.constant 0 : index
    %299 = vector.load %arg5[%c0_115, %c0_116] : memref<128x4xf32, #tpu.memory_space<vmem>>, vector<128x4xf32>
    %cst_117 = arith.constant dense<0.000000e+00> : vector<8x4xf32>
    %300 = tpu.matmul %298, %299, %cst_117 {dimension_numbers = #tpu.dot_dimension_numbers<[1], [0], [0], [1], [0, 0, 1, 1], [], []>} : vector<8x128xf32>, vector<128x4xf32>, vector<8x4xf32> -> vector<8x4xf32>
    %c0_118 = arith.constant 0 : index
    %c0_119 = arith.constant 0 : index
    %301 = vector.load %arg6[%c0_118, %c0_119] : memref<1x4xf32, #tpu.memory_space<vmem>>, vector<1x4xf32>
    %302 = vector.broadcast %301 : vector<1x4xf32> to vector<8x4xf32>
    %303 = arith.addf %300, %302 : vector<8x4xf32>
    %c0_120 = arith.constant 0 : index
    %c0_121 = arith.constant 0 : index
    %304 = vector.load %arg7[%c0_120, %c0_121] : memref<8x4xf32, #tpu.memory_space<vmem>>, vector<8x4xf32>
    tpu.vector_store %arg7[%c0_120, %c0_121], %303 {strides = array<i32>} : memref<8x4xf32, #tpu.memory_space<vmem>>, vector<8x4xf32>,
    return
  }
  func.func @transform_0(%arg0: i32) -> (i32, i32, i32) {
    %c0_i32 = arith.constant 0 : i32
    %c0_i32_0 = arith.constant 0 : i32
    %c0_i32_1 = arith.constant 0 : i32
    return %arg0, %c0_i32, %c0_i32_0 : i32, i32, i32
  }
  func.func @transform_1(%arg0: i32) -> (i32, i32) {
    %c0_i32 = arith.constant 0 : i32
    %c0_i32_0 = arith.constant 0 : i32
    %c0_i32_1 = arith.constant 0 : i32
    return %c0_i32, %c0_i32_0 : i32, i32
  }
  func.func @transform_2(%arg0: i32) -> (i32, i32) {
    %c0_i32 = arith.constant 0 : i32
    %c0_i32_0 = arith.constant 0 : i32
    %c0_i32_1 = arith.constant 0 : i32
    return %c0_i32, %c0_i32_0 : i32, i32
  }
  func.func @transform_3(%arg0: i32) -> (i32, i32) {
    %c0_i32 = arith.constant 0 : i32
    %c0_i32_0 = arith.constant 0 : i32
    %c0_i32_1 = arith.constant 0 : i32
    return %c0_i32, %c0_i32_0 : i32, i32
  }
  func.func @transform_4(%arg0: i32) -> (i32, i32) {
    %c0_i32 = arith.constant 0 : i32
    %c0_i32_0 = arith.constant 0 : i32
    %c0_i32_1 = arith.constant 0 : i32
    return %c0_i32, %c0_i32_0 : i32, i32
  }
  func.func @transform_5(%arg0: i32) -> (i32, i32) {
    %c0_i32 = arith.constant 0 : i32
    %c0_i32_0 = arith.constant 0 : i32
    %c0_i32_1 = arith.constant 0 : i32
    return %c0_i32, %c0_i32_0 : i32, i32
  }
  func.func @transform_6(%arg0: i32) -> (i32, i32) {
    %c0_i32 = arith.constant 0 : i32
    %c0_i32_0 = arith.constant 0 : i32
    return %arg0, %c0_i32 : i32, i32
  }
}

</mosaic_0001>

<llo_original>
// kernel: tpu_custom_call.1
$region0: #{tpu_custom_call.1}
  #allocation0 [shape = 'u32[]', space=smem, size = 0x4, offset = 0x4, fixed_abs, tag = 'smem constant byte address 0x4 - core index']
  #allocation1 [shape = 'u32[72,128]{1,0:T(1,128)}', space=vmem, size = 0x9000, scoped, tag = 'internal scratch']
  #allocation2 [shape = 'f32[64,512]{1,0:T(8,128)}', space=vmem, size = 0x20000, scoped, tag = 'scratch operand']
  %s0 = inlined_call_operand.vmem [shape: f32[1,64,16], index: 0, kind: input, shape index: {}]
  %s1 = inlined_call_operand.vmem [shape: bf16[16,512], index: 1, kind: input, shape index: {}]
  %s2 = inlined_call_operand.hbm [shape: bf16[128,512], index: 2, kind: input, shape index: {}]
  %s3 = inlined_call_operand.vmem [shape: f32[1,512], index: 3, kind: input, shape index: {}]
  %s4 = inlined_call_operand.vmem [shape: f32[128,4], index: 4, kind: input, shape index: {}]
  %s5 = inlined_call_operand.vmem [shape: f32[1,4], index: 5, kind: input, shape index: {}]
  %s6 = inlined_call_operand.vmem [shape: f32[8,4], index: 6, kind: output, shape index: {}]
  %s7 = sld [smem:[#allocation0]]
  $region38: #{tpu_custom_call.1} parent=0
    _
  %s9 = ssub.s32 1, %s7
  %s10 = scalar_select 0, %s9, %s7
  $region1: #{tpu_custom_call.1} parent=0
    #allocation3 [shape = 'u8[131072]{0}', space=vmem, size = 0x20000, scoped, tag = 'input window, operand 2, single buffered']
    #allocation4 [shape = 's32[1]{0}', space=sflag, size = 0x4, scoped, tag = 'scoped memory for tpu_custom_call.1']
    %11 = vsyncpa [#allocation4], 0
    // Predicated region
    $region2: #{tpu_custom_call.1} parent=1 // pred_check
      _
    $region3: #{tpu_custom_call.1} parent=1 // pred_check_branch
      %13 = sbr.rel (0) target = $region5
    $region4: #{tpu_custom_call.1} parent=1 // pred_region
      _
    $region5: #{tpu_custom_call.1} parent=1 // pred_fallthru
      _
    // Predicated region
    $region6: #{tpu_custom_call.1} parent=1 // pred_check
      _
    $region7: #{tpu_custom_call.1} parent=1 // pred_check_branch
      %15 = sbr.rel (0) target = $region9
    $region8: #{tpu_custom_call.1} parent=1 // pred_region
      _
    $region9: #{tpu_custom_call.1} parent=1 // pred_fallthru
      _
    // Predicated region
    $region10: #{tpu_custom_call.1} parent=1 // pred_check
      _
    $region11: #{tpu_custom_call.1} parent=1 // pred_check_branch
      %17 = sbr.rel (0) target = $region13
    $region12: #{tpu_custom_call.1} parent=1 // pred_region
      %19 = vsyncadd [#allocation4], 0
      %s20 = sshll.u32 %s2, 4
      %s21 = int_to_ptr.hbm [resolvable:$true] %s20
      %s22 = sshll.u32 [#allocation3], 4
      %s23 = int_to_ptr.vmem [resolvable:$true] %s22
      %28 = dma.hbm_to_vmem [thread:$0]  %s21, 4096, %s23, [#allocation4], 256, 256, 16
    $region13: #{tpu_custom_call.1} parent=1 // pred_fallthru
      _
    // Predicated region
    $region14: #{tpu_custom_call.1} parent=1 // pred_check
      _
    $region15: #{tpu_custom_call.1} parent=1 // pred_check_branch
      %30 = sbr.rel (0) target = $region17
    $region16: #{tpu_custom_call.1} parent=1 // pred_region
      _
    $region17: #{tpu_custom_call.1} parent=1 // pred_fallthru
      _
    // Predicated region
    $region18: #{tpu_custom_call.1} parent=1 // pred_check
      _
    $region19: #{tpu_custom_call.1} parent=1 // pred_check_branch
      %32 = sbr.rel (0) target = $region21
    $region20: #{tpu_custom_call.1} parent=1 // pred_region
      _
    $region21: #{tpu_custom_call.1} parent=1 // pred_fallthru
      _
    // Predicated region
    $region22: #{tpu_custom_call.1} parent=1 // pred_check
      _
    $region23: #{tpu_custom_call.1} parent=1 // pred_check_branch
      %34 = sbr.rel (0) target = $region25
    $region24: #{tpu_custom_call.1} parent=1 // pred_region
      _
    $region25: #{tpu_custom_call.1} parent=1 // pred_fallthru
      _
    // Predicated region
    $region26: #{tpu_custom_call.1} parent=1 // pred_check
      _
    $region27: #{tpu_custom_call.1} parent=1 // pred_check_branch
      %36 = sbr.rel (0) target = $region29
    $region28: #{tpu_custom_call.1} parent=1 // pred_region
      %38 = dma.done [#allocation4], 4096
    $region29: #{tpu_custom_call.1} parent=1 // pred_fallthru
      _
    %v40 = vld [vmem:[%s0] sm:$0xff]
    %v41 = vld [vmem:[%s0 + $0x8] sm:$0xff]
    %v42 = vld [vmem:[%s0 + $0x10] sm:$0xff]
    %v43 = vld [vmem:[%s0 + $0x18] sm:$0xff]
    %v44 = vld [vmem:[%s0 + $0x20] sm:$0xff]
    %v45 = vld [vmem:[%s0 + $0x28] sm:$0xff]
    %v46 = vld [vmem:[%s0 + $0x30] sm:$0xff]
    %v47 = vld [vmem:[%s0 + $0x38] sm:$0xff]
    %v48 = vpack.c.bf16 %v41, %v40
    %v49 = vpack.c.bf16 %v43, %v42
    %v50 = vpack.c.bf16 %v45, %v44
    %v51 = vpack.c.bf16 %v47, %v46
    %v52 = vld [vmem:[%s1] sm:$0xff]
    %v53 = vld [vmem:[%s1 + $0x8] sm:$0xff]
    %v54 = vld [vmem:[%s1 + $0x10] sm:$0xff]
    %v55 = vld [vmem:[%s1 + $0x18] sm:$0xff]
    %v56 = vld [vmem:[%s3] sm:$0xf]
    %v58 = vperm.slane %v56, 0
    %v59 = vperm.slane %v56, 1
    %v60 = vperm.slane %v56, 2
    %v61 = vperm.slane %v56, 3
    %v70 = vunpack.c.l.b16 %v52
    %v71 = vunpack.c.h.b16 %v52
    %v72 = vunpack.c.l.b16 %v53
    %v73 = vunpack.c.h.b16 %v53
    %v74 = vunpack.c.l.b16 %v54
    %v75 = vunpack.c.h.b16 %v54
    %v76 = vunpack.c.l.b16 %v55
    %v77 = vunpack.c.h.b16 %v55
    %v78 = vpack.c.b16 %v74, %v70
    %v79 = vpack.c.b16 %v75, %v71
    %v80 = vpack.c.b16 %v76, %v72
    %v81 = vpack.c.b16 %v77, %v73
    %vm86 = vcmask 130048
    %v88 = vsel %vm86, %v48, 0
    %v91 = vsel %vm86, %v49, 0
    %v94 = vsel %vm86, %v50, 0
    %v97 = vsel %vm86, %v51, 0
    %99 = vmatpush.bf16.msra.mxu0 0
    %100 = vmatpush.bf16.msra.mxu0 0
    %101 = vmatpush.bf16.msra.mxu0 0
    %102 = vmatpush.bf16.msra.mxu0 0
    %103 = vmatpush.bf16.msra.mxu0 0
    %104 = vmatpush.bf16.msra.mxu0 0
    %105 = vmatpush.bf16.msra.mxu0 0
    %106 = vmatpush.bf16.msra.mxu0 %v78
    %107 = vmatmul.bf16.gmra.mxu0 %v88
    %v108 = vpop.f32.mrf.mxu0
    %v109 = vadd.f32 %v58, %v108
    %v110 = vpop.f32.mrf.mxu0
    %v111 = vadd.f32 %v58, %v110
    %112 = vmatmul.bf16.gmra.mxu0 %v91
    %v113 = vpop.f32.mrf.mxu0
    %v114 = vadd.f32 %v58, %v113
    %v115 = vpop.f32.mrf.mxu0
    %v116 = vadd.f32 %v58, %v115
    %117 = vmatmul.bf16.gmra.mxu0 %v94
    %v118 = vpop.f32.mrf.mxu0
    %v119 = vadd.f32 %v58, %v118
    %v120 = vpop.f32.mrf.mxu0
    %v121 = vadd.f32 %v58, %v120
    %122 = vmatmul.bf16.gmra.mxu0 %v97
    %v123 = vpop.f32.mrf.mxu0
    %v124 = vadd.f32 %v58, %v123
    %v125 = vpop.f32.mrf.mxu0
    %v126 = vadd.f32 %v58, %v125
    %127 = vdwg.mxu0
    %128 = vmatpush.bf16.msra.mxu0 0
    %129 = vmatpush.bf16.msra.mxu0 0
    %130 = vmatpush.bf16.msra.mxu0 0
    %131 = vmatpush.bf16.msra.mxu0 0
    %132 = vmatpush.bf16.msra.mxu0 0
    %133 = vmatpush.bf16.msra.mxu0 0
    %134 = vmatpush.bf16.msra.mxu0 0
    %135 = vmatpush.bf16.msra.mxu0 %v79
    %136 = vmatmul.bf16.gmra.mxu0 %v88
    %v137 = vpop.f32.mrf.mxu0
    %v138 = vadd.f32 %v59, %v137
    %v139 = vpop.f32.mrf.mxu0
    %v140 = vadd.f32 %v59, %v139
    %141 = vmatmul.bf16.gmra.mxu0 %v91
    %v142 = vpop.f32.mrf.mxu0
    %v143 = vadd.f32 %v59, %v142
    %v144 = vpop.f32.mrf.mxu0
    %v145 = vadd.f32 %v59, %v144
    %146 = vmatmul.bf16.gmra.mxu0 %v94
    %v147 = vpop.f32.mrf.mxu0
    %v148 = vadd.f32 %v59, %v147
    %v149 = vpop.f32.mrf.mxu0
    %v150 = vadd.f32 %v59, %v149
    %151 = vmatmul.bf16.gmra.mxu0 %v97
    %v152 = vpop.f32.mrf.mxu0
    %v153 = vadd.f32 %v59, %v152
    %v154 = vpop.f32.mrf.mxu0
    %v155 = vadd.f32 %v59, %v154
    %156 = vdwg.mxu0
    %157 = vmatpush.bf16.msra.mxu0 0
    %158 = vmatpush.bf16.msra.mxu0 0
    %159 = vmatpush.bf16.msra.mxu0 0
    %160 = vmatpush.bf16.msra.mxu0 0
    %161 = vmatpush.bf16.msra.mxu0 0
    %162 = vmatpush.bf16.msra.mxu0 0
    %163 = vmatpush.bf16.msra.mxu0 0
    %164 = vmatpush.bf16.msra.mxu0 %v80
    %165 = vmatmul.bf16.gmra.mxu0 %v88
    %v166 = vpop.f32.mrf.mxu0
    %v167 = vadd.f32 %v60, %v166
    %v168 = vpop.f32.mrf.mxu0
    %v169 = vadd.f32 %v60, %v168
    %170 = vmatmul.bf16.gmra.mxu0 %v91
    %v171 = vpop.f32.mrf.mxu0
    %v172 = vadd.f32 %v60, %v171
    %v173 = vpop.f32.mrf.mxu0
    %v174 = vadd.f32 %v60, %v173
    %175 = vmatmul.bf16.gmra.mxu0 %v94
    %v176 = vpop.f32.mrf.mxu0
    %v177 = vadd.f32 %v60, %v176
    %v178 = vpop.f32.mrf.mxu0
    %v179 = vadd.f32 %v60, %v178
    %180 = vmatmul.bf16.gmra.mxu0 %v97
    %v181 = vpop.f32.mrf.mxu0
    %v182 = vadd.f32 %v60, %v181
    %v183 = vpop.f32.mrf.mxu0
    %v184 = vadd.f32 %v60, %v183
    %185 = vdwg.mxu0
    %186 = vmatpush.bf16.msra.mxu0 0
    %187 = vmatpush.bf16.msra.mxu0 0
    %188 = vmatpush.bf16.msra.mxu0 0
    %189 = vmatpush.bf16.msra.mxu0 0
    %190 = vmatpush.bf16.msra.mxu0 0
    %191 = vmatpush.bf16.msra.mxu0 0
    %192 = vmatpush.bf16.msra.mxu0 0
    %193 = vmatpush.bf16.msra.mxu0 %v81
    %194 = vmatmul.bf16.gmra.mxu0 %v88
    %v195 = vpop.f32.mrf.mxu0
    %v196 = vadd.f32 %v61, %v195
    %v197 = vpop.f32.mrf.mxu0
    %v198 = vadd.f32 %v61, %v197
    %199 = vmatmul.bf16.gmra.mxu0 %v91
    %v200 = vpop.f32.mrf.mxu0
    %v201 = vadd.f32 %v61, %v200
    %v202 = vpop.f32.mrf.mxu0
    %v203 = vadd.f32 %v61, %v202
    %204 = vmatmul.bf16.gmra.mxu0 %v94
    %v205 = vpop.f32.mrf.mxu0
    %v206 = vadd.f32 %v61, %v205
    %v207 = vpop.f32.mrf.mxu0
    %v208 = vadd.f32 %v61, %v207
    %209 = vmatmul.bf16.gmra.mxu0 %v97
    %v210 = vpop.f32.mrf.mxu0
    %v211 = vadd.f32 %v61, %v210
    %v212 = vpop.f32.mrf.mxu0
    %v213 = vadd.f32 %v61, %v212
    %214 = vdwg.mxu0
    %215 = vst [vmem:[#allocation2] sm:$0xff] %v109
    %216 = vst [vmem:[#allocation2 + $0x8] sm:$0xff] %v138
    %217 = vst [vmem:[#allocation2 + $0x10] sm:$0xff] %v167
    %218 = vst [vmem:[#allocation2 + $0x18] sm:$0xff] %v196
    %219 = vst [vmem:[#allocation2 + $0x20] sm:$0xff] %v111
    %220 = vst [vmem:[#allocation2 + $0x28] sm:$0xff] %v140
    %221 = vst [vmem:[#allocation2 + $0x30] sm:$0xff] %v169
    %222 = vst [vmem:[#allocation2 + $0x38] sm:$0xff] %v198
    %223 = vst [vmem:[#allocation2 + $0x40] sm:$0xff] %v114
    %224 = vst [vmem:[#allocation2 + $0x48] sm:$0xff] %v143
    %225 = vst [vmem:[#allocation2 + $0x50] sm:$0xff] %v172
    %226 = vst [vmem:[#allocation2 + $0x58] sm:$0xff] %v201
    %227 = vst [vmem:[#allocation2 + $0x60] sm:$0xff] %v116
    %228 = vst [vmem:[#allocation2 + $0x68] sm:$0xff] %v145
    %229 = vst [vmem:[#allocation2 + $0x70] sm:$0xff] %v174
    %230 = vst [vmem:[#allocation2 + $0x78] sm:$0xff] %v203
    %231 = vst [vmem:[#allocation2 + $0x80] sm:$0xff] %v119
    %232 = vst [vmem:[#allocation2 + $0x88] sm:$0xff] %v148
    %233 = vst [vmem:[#allocation2 + $0x90] sm:$0xff] %v177
    %234 = vst [vmem:[#allocation2 + $0x98] sm:$0xff] %v206
    %235 = vst [vmem:[#allocation2 + $0xa0] sm:$0xff] %v121
    %236 = vst [vmem:[#allocation2 + $0xa8] sm:$0xff] %v150
    %237 = vst [vmem:[#allocation2 + $0xb0] sm:$0xff] %v179
    %238 = vst [vmem:[#allocation2 + $0xb8] sm:$0xff] %v208
    %239 = vst [vmem:[#allocation2 + $0xc0] sm:$0xff] %v124
    %240 = vst [vmem:[#allocation2 + $0xc8] sm:$0xff] %v153
    %241 = vst [vmem:[#allocation2 + $0xd0] sm:$0xff] %v182
    %242 = vst [vmem:[#allocation2 + $0xd8] sm:$0xff] %v211
    %243 = vst [vmem:[#allocation2 + $0xe0] sm:$0xff] %v126
    %244 = vst [vmem:[#allocation2 + $0xe8] sm:$0xff] %v155
    %245 = vst [vmem:[#allocation2 + $0xf0] sm:$0xff] %v184
    %246 = vst [vmem:[#allocation2 + $0xf8] sm:$0xff] %v213
    %v247 = vld [vmem:[#allocation2] sm:$0xff]
    %v248 = vld [vmem:[#allocation2 + $0x8] sm:$0xff]
    %v249 = vld [vmem:[#allocation2 + $0x10] sm:$0xff]
    %v250 = vld [vmem:[#allocation2 + $0x18] sm:$0xff]
    %v251 = vld [vmem:[#allocation3] sm:$0xff]
    %v252 = vld [vmem:[#allocation3 + $0x8] sm:$0xff]
    %v253 = vld [vmem:[#allocation3 + $0x10] sm:$0xff]
    %v254 = vld [vmem:[#allocation3 + $0x18] sm:$0xff]
    %v255 = vld [vmem:[#allocation3 + $0x20] sm:$0xff]
    %v256 = vld [vmem:[#allocation3 + $0x28] sm:$0xff]
    %v257 = vld [vmem:[#allocation3 + $0x30] sm:$0xff]
    %v258 = vld [vmem:[#allocation3 + $0x38] sm:$0xff]
    %v259 = vld [vmem:[#allocation3 + $0x40] sm:$0xff]
    %v260 = vld [vmem:[#allocation3 + $0x48] sm:$0xff]
    %v261 = vld [vmem:[#allocation3 + $0x50] sm:$0xff]
    %v262 = vld [vmem:[#allocation3 + $0x58] sm:$0xff]
    %v263 = vld [vmem:[#allocation3 + $0x60] sm:$0xff]
    %v264 = vld [vmem:[#allocation3 + $0x68] sm:$0xff]
    %v265 = vld [vmem:[#allocation3 + $0x70] sm:$0xff]
    %v266 = vld [vmem:[#allocation3 + $0x78] sm:$0xff]
    %v267 = vld [vmem:[#allocation3 + $0x80] sm:$0xff]
    %v268 = vld [vmem:[#allocation3 + $0x88] sm:$0xff]
    %v269 = vld [vmem:[#allocation3 + $0x90] sm:$0xff]
    %v270 = vld [vmem:[#allocation3 + $0x98] sm:$0xff]
    %v271 = vld [vmem:[#allocation3 + $0xa0] sm:$0xff]
    %v272 = vld [vmem:[#allocation3 + $0xa8] sm:$0xff]
    %v273 = vld [vmem:[#allocation3 + $0xb0] sm:$0xff]
    %v274 = vld [vmem:[#allocation3 + $0xb8] sm:$0xff]
    %v275 = vld [vmem:[#allocation3 + $0xc0] sm:$0xff]
    %v276 = vld [vmem:[#allocation3 + $0xc8] sm:$0xff]
    %v277 = vld [vmem:[#allocation3 + $0xd0] sm:$0xff]
    %v278 = vld [vmem:[#allocation3 + $0xd8] sm:$0xff]
    %v279 = vld [vmem:[#allocation3 + $0xe0] sm:$0xff]
    %v280 = vld [vmem:[#allocation3 + $0xe8] sm:$0xff]
    %v281 = vld [vmem:[#allocation3 + $0xf0] sm:$0xff]
    %v282 = vld [vmem:[#allocation3 + $0xf8] sm:$0xff]
    %v315 = vunpack.c.l.b16 %v251
    %v316 = vunpack.c.h.b16 %v251
    %v317 = vunpack.c.l.b16 %v252
    %v318 = vunpack.c.h.b16 %v252
    %v319 = vunpack.c.l.b16 %v253
    %v320 = vunpack.c.h.b16 %v253
    %v321 = vunpack.c.l.b16 %v254
    %v322 = vunpack.c.h.b16 %v254
    %v323 = vunpack.c.l.b16 %v255
    %v324 = vunpack.c.h.b16 %v255
    %v325 = vunpack.c.l.b16 %v256
    %v326 = vunpack.c.h.b16 %v256
    %v327 = vunpack.c.l.b16 %v257
    %v328 = vunpack.c.h.b16 %v257
    %v329 = vunpack.c.l.b16 %v258
    %v330 = vunpack.c.h.b16 %v258
    %v331 = vunpack.c.l.b16 %v259
    %v332 = vunpack.c.h.b16 %v259
    %v333 = vunpack.c.l.b16 %v260
    %v334 = vunpack.c.h.b16 %v260
    %v335 = vunpack.c.l.b16 %v261
    %v336 = vunpack.c.h.b16 %v261
    %v337 = vunpack.c.l.b16 %v262
    %v338 = vunpack.c.h.b16 %v262
    %v339 = vunpack.c.l.b16 %v263
    %v340 = vunpack.c.h.b16 %v263
    %v341 = vunpack.c.l.b16 %v264
    %v342 = vunpack.c.h.b16 %v264
    %v343 = vunpack.c.l.b16 %v265
    %v344 = vunpack.c.h.b16 %v265
    %v345 = vunpack.c.l.b16 %v266
    %v346 = vunpack.c.h.b16 %v266
    %v347 = vunpack.c.l.b16 %v267
    %v348 = vunpack.c.h.b16 %v267
    %v349 = vunpack.c.l.b16 %v268
    %v350 = vunpack.c.h.b16 %v268
    %v351 = vunpack.c.l.b16 %v269
    %v352 = vunpack.c.h.b16 %v269
    %v353 = vunpack.c.l.b16 %v270
    %v354 = vunpack.c.h.b16 %v270
    %v355 = vunpack.c.l.b16 %v271
    %v356 = vunpack.c.h.b16 %v271
    %v357 = vunpack.c.l.b16 %v272
    %v358 = vunpack.c.h.b16 %v272
    %v359 = vunpack.c.l.b16 %v273
    %v360 = vunpack.c.h.b16 %v273
    %v361 = vunpack.c.l.b16 %v274
    %v362 = vunpack.c.h.b16 %v274
    %v363 = vunpack.c.l.b16 %v275
    %v364 = vunpack.c.h.b16 %v275
    %v365 = vunpack.c.l.b16 %v276
    %v366 = vunpack.c.h.b16 %v276
    %v367 = vunpack.c.l.b16 %v277
    %v368 = vunpack.c.h.b16 %v277
    %v369 = vunpack.c.l.b16 %v278
    %v370 = vunpack.c.h.b16 %v278
    %v371 = vunpack.c.l.b16 %v279
    %v372 = vunpack.c.h.b16 %v279
    %v373 = vunpack.c.l.b16 %v280
    %v374 = vunpack.c.h.b16 %v280
    %v375 = vunpack.c.l.b16 %v281
    %v376 = vunpack.c.h.b16 %v281
    %v377 = vunpack.c.l.b16 %v282
    %v378 = vunpack.c.h.b16 %v282
    %v379 = vpack.c.b16 %v319, %v315
    %v380 = vpack.c.b16 %v320, %v316
    %v381 = vpack.c.b16 %v321, %v317
    %v382 = vpack.c.b16 %v322, %v318
    %v383 = vpack.c.b16 %v327, %v323
    %v384 = vpack.c.b16 %v328, %v324
    %v385 = vpack.c.b16 %v329, %v325
    %v386 = vpack.c.b16 %v330, %v326
    %v387 = vpack.c.b16 %v335, %v331
    %v388 = vpack.c.b16 %v336, %v332
    %v389 = vpack.c.b16 %v337, %v333
    %v390 = vpack.c.b16 %v338, %v334
    %v391 = vpack.c.b16 %v343, %v339
    %v392 = vpack.c.b16 %v344, %v340
    %v393 = vpack.c.b16 %v345, %v341
    %v394 = vpack.c.b16 %v346, %v342
    %v395 = vpack.c.b16 %v351, %v347
    %v396 = vpack.c.b16 %v352, %v348
    %v397 = vpack.c.b16 %v353, %v349
    %v398 = vpack.c.b16 %v354, %v350
    %v399 = vpack.c.b16 %v359, %v355
    %v400 = vpack.c.b16 %v360, %v356
    %v401 = vpack.c.b16 %v361, %v357
    %v402 = vpack.c.b16 %v362, %v358
    %v403 = vpack.c.b16 %v367, %v363
    %v404 = vpack.c.b16 %v368, %v364
    %v405 = vpack.c.b16 %v369, %v365
    %v406 = vpack.c.b16 %v370, %v366
    %v407 = vpack.c.b16 %v375, %v371
    %v408 = vpack.c.b16 %v376, %v372
    %v409 = vpack.c.b16 %v377, %v373
    %v410 = vpack.c.b16 %v378, %v374
    %443 = vmatpush.bf16.msra.mxu0 %v407
    %444 = vmatpush.bf16.msra.mxu0 %v403
    %445 = vmatpush.bf16.msra.mxu0 %v399
    %446 = vmatpush.bf16.msra.mxu0 %v395
    %447 = vmatpush.bf16.msra.mxu0 %v391
    %448 = vmatpush.bf16.msra.mxu0 %v387
    %449 = vmatpush.bf16.msra.mxu0 %v383
    %450 = vmatpush.bf16.msra.mxu0 %v379
    %451 = vmatmul.bf16.gmra.mxu0 0
    %v452 = vpop.f32.mrf.mxu0
    %v453 = vadd.f32 0.0, %v452
    %v454 = vpop.f32.mrf.mxu0
    %455 = vdwg.mxu0
    %456 = vmatpush.bf16.msra.mxu0 %v408
    %457 = vmatpush.bf16.msra.mxu0 %v404
    %458 = vmatpush.bf16.msra.mxu0 %v400
    %459 = vmatpush.bf16.msra.mxu0 %v396
    %460 = vmatpush.bf16.msra.mxu0 %v392
    %461 = vmatpush.bf16.msra.mxu0 %v388
    %462 = vmatpush.bf16.msra.mxu0 %v384
    %463 = vmatpush.bf16.msra.mxu0 %v380
    %464 = vmatmul.bf16.gmra.mxu0 0
    %v465 = vpop.f32.mrf.mxu0
    %v466 = vadd.f32 0.0, %v465
    %v467 = vpop.f32.mrf.mxu0
    %468 = vdwg.mxu0
    %469 = vmatpush.bf16.msra.mxu0 %v409
    %470 = vmatpush.bf16.msra.mxu0 %v405
    %471 = vmatpush.bf16.msra.mxu0 %v401
    %472 = vmatpush.bf16.msra.mxu0 %v397
    %473 = vmatpush.bf16.msra.mxu0 %v393
    %474 = vmatpush.bf16.msra.mxu0 %v389
    %475 = vmatpush.bf16.msra.mxu0 %v385
    %476 = vmatpush.bf16.msra.mxu0 %v381
    %477 = vmatmul.bf16.gmra.mxu0 0
    %v478 = vpop.f32.mrf.mxu0
    %v479 = vadd.f32 0.0, %v478
    %v480 = vpop.f32.mrf.mxu0
    %481 = vdwg.mxu0
    %482 = vmatpush.bf16.msra.mxu0 %v410
    %483 = vmatpush.bf16.msra.mxu0 %v406
    %484 = vmatpush.bf16.msra.mxu0 %v402
    %485 = vmatpush.bf16.msra.mxu0 %v398
    %486 = vmatpush.bf16.msra.mxu0 %v394
    %487 = vmatpush.bf16.msra.mxu0 %v390
    %488 = vmatpush.bf16.msra.mxu0 %v386
    %489 = vmatpush.bf16.msra.mxu0 %v382
    %490 = vmatmul.bf16.gmra.mxu0 0
    %v491 = vpop.f32.mrf.mxu0
    %v492 = vadd.f32 0.0, %v491
    %v493 = vpop.f32.mrf.mxu0
    %494 = vdwg.mxu0
    %v495 = vadd.f32 %v247, %v453
    %v496 = vadd.f32 %v248, %v466
    %v497 = vadd.f32 %v249, %v479
    %v498 = vadd.f32 %v250, %v492
    %v499 = vmul.f32 %v495, 0.5
    %v500 = vtanh.pop %v499
    %v501 = vmul.f32 %v500, 0.5
    %v502 = vadd.f32 %v501, 0.5
    %v503 = vmul.f32 %v496, 0.5
    %v504 = vtanh.pop %v503
    %v505 = vmul.f32 %v504, 0.5
    %v506 = vadd.f32 %v505, 0.5
    %v507 = vtanh.pop %v497
    %v508 = vmul.f32 %v498, 0.5
    %v509 = vtanh.pop %v508
    %v510 = vmul.f32 %v509, 0.5
    %v511 = vadd.f32 %v510, 0.5
    %v512 = vmul.f32 %v506, 0.0
    %v513 = vmul.f32 %v502, %v507
    %v514 = vadd.f32 %v512, %v513
    %v515 = vtanh.pop %v514
    %v516 = vmul.f32 %v511, %v515
    %v517 = vld [vmem:[#allocation2 + $0x20] sm:$0xff]
    %v518 = vld [vmem:[#allocation2 + $0x28] sm:$0xff]
    %v519 = vld [vmem:[#allocation2 + $0x30] sm:$0xff]
    %v520 = vld [vmem:[#allocation2 + $0x38] sm:$0xff]
    %v521 = vpack.c.bf16 %v516, %v516
    %522 = vmatpush.bf16.msra.mxu0 %v407
    %523 = vmatpush.bf16.msra.mxu0 %v403
    %524 = vmatpush.bf16.msra.mxu0 %v399
    %525 = vmatpush.bf16.msra.mxu0 %v395
    %526 = vmatpush.bf16.msra.mxu0 %v391
    %527 = vmatpush.bf16.msra.mxu0 %v387
    %528 = vmatpush.bf16.msra.mxu0 %v383
    %529 = vmatpush.bf16.msra.mxu0 %v379
    %530 = vmatmul.bf16.gmra.mxu0 %v521
    %v531 = vpop.f32.mrf.mxu0
    %v532 = vadd.f32 0.0, %v531
    %v533 = vpop.f32.mrf.mxu0
    %534 = vdwg.mxu0
    %535 = vmatpush.bf16.msra.mxu0 %v408
    %536 = vmatpush.bf16.msra.mxu0 %v404
    %537 = vmatpush.bf16.msra.mxu0 %v400
    %538 = vmatpush.bf16.msra.mxu0 %v396
    %539 = vmatpush.bf16.msra.mxu0 %v392
    %540 = vmatpush.bf16.msra.mxu0 %v388
    %541 = vmatpush.bf16.msra.mxu0 %v384
    %542 = vmatpush.bf16.msra.mxu0 %v380
    %543 = vmatmul.bf16.gmra.mxu0 %v521
    %v544 = vpop.f32.mrf.mxu0
    %v545 = vadd.f32 0.0, %v544
    %v546 = vpop.f32.mrf.mxu0
    %547 = vdwg.mxu0
    %548 = vmatpush.bf16.msra.mxu0 %v409
    %549 = vmatpush.bf16.msra.mxu0 %v405
    %550 = vmatpush.bf16.msra.mxu0 %v401
    %551 = vmatpush.bf16.msra.mxu0 %v397
    %552 = vmatpush.bf16.msra.mxu0 %v393
    %553 = vmatpush.bf16.msra.mxu0 %v389
    %554 = vmatpush.bf16.msra.mxu0 %v385
    %555 = vmatpush.bf16.msra.mxu0 %v381
    %556 = vmatmul.bf16.gmra.mxu0 %v521
    %v557 = vpop.f32.mrf.mxu0
    %v558 = vadd.f32 0.0, %v557
    %v559 = vpop.f32.mrf.mxu0
    %560 = vdwg.mxu0
    %561 = vmatpush.bf16.msra.mxu0 %v410
    %562 = vmatpush.bf16.msra.mxu0 %v406
    %563 = vmatpush.bf16.msra.mxu0 %v402
    %564 = vmatpush.bf16.msra.mxu0 %v398
    %565 = vmatpush.bf16.msra.mxu0 %v394
    %566 = vmatpush.bf16.msra.mxu0 %v390
    %567 = vmatpush.bf16.msra.mxu0 %v386
    %568 = vmatpush.bf16.msra.mxu0 %v382
    %569 = vmatmul.bf16.gmra.mxu0 %v521
    %v570 = vpop.f32.mrf.mxu0
    %v571 = vadd.f32 0.0, %v570
    %v572 = vpop.f32.mrf.mxu0
    %573 = vdwg.mxu0
    %v574 = vadd.f32 %v517, %v532
    %v575 = vadd.f32 %v518, %v545
    %v576 = vadd.f32 %v519, %v558
    %v577 = vadd.f32 %v520, %v571
    %v578 = vmul.f32 %v574, 0.5
    %v579 = vtanh.pop %v578
    %v580 = vmul.f32 %v579, 0.5
    %v581 = vadd.f32 %v580, 0.5
    %v582 = vmul.f32 %v575, 0.5
    %v583 = vtanh.pop %v582
    %v584 = vmul.f32 %v583, 0.5
    %v585 = vadd.f32 %v584, 0.5
    %v586 = vtanh.pop %v576
    %v587 = vmul.f32 %v577, 0.5
    %v588 = vtanh.pop %v587
    %v589 = vmul.f32 %v588, 0.5
    %v590 = vadd.f32 %v589, 0.5
    %v591 = vmul.f32 %v585, %v514
    %v592 = vmul.f32 %v581, %v586
    %v593 = vadd.f32 %v591, %v592
    %v594 = vtanh.pop %v593
    %v595 = vmul.f32 %v590, %v594
    %v596 = vld [vmem:[#allocation2 + $0x40] sm:$0xff]
    %v597 = vld [vmem:[#allocation2 + $0x48] sm:$0xff]
    %v598 = vld [vmem:[#allocation2 + $0x50] sm:$0xff]
    %v599 = vld [vmem:[#allocation2 + $0x58] sm:$0xff]
    %v600 = vpack.c.bf16 %v595, %v595
    %601 = vmatpush.bf16.msra.mxu0 %v407
    %602 = vmatpush.bf16.msra.mxu0 %v403
    %603 = vmatpush.bf16.msra.mxu0 %v399
    %604 = vmatpush.bf16.msra.mxu0 %v395
    %605 = vmatpush.bf16.msra.mxu0 %v391
    %606 = vmatpush.bf16.msra.mxu0 %v387
    %607 = vmatpush.bf16.msra.mxu0 %v383
    %608 = vmatpush.bf16.msra.mxu0 %v379
    %609 = vmatmul.bf16.gmra.mxu0 %v600
    %v610 = vpop.f32.mrf.mxu0
    %v611 = vadd.f32 0.0, %v610
    %v612 = vpop.f32.mrf.mxu0
    %613 = vdwg.mxu0
    %614 = vmatpush.bf16.msra.mxu0 %v408
    %615 = vmatpush.bf16.msra.mxu0 %v404
    %616 = vmatpush.bf16.msra.mxu0 %v400
    %617 = vmatpush.bf16.msra.mxu0 %v396
    %618 = vmatpush.bf16.msra.mxu0 %v392
    %619 = vmatpush.bf16.msra.mxu0 %v388
    %620 = vmatpush.bf16.msra.mxu0 %v384
    %621 = vmatpush.bf16.msra.mxu0 %v380
    %622 = vmatmul.bf16.gmra.mxu0 %v600
    %v623 = vpop.f32.mrf.mxu0
    %v624 = vadd.f32 0.0, %v623
    %v625 = vpop.f32.mrf.mxu0
    %626 = vdwg.mxu0
    %627 = vmatpush.bf16.msra.mxu0 %v409
    %628 = vmatpush.bf16.msra.mxu0 %v405
    %629 = vmatpush.bf16.msra.mxu0 %v401
    %630 = vmatpush.bf16.msra.mxu0 %v397
    %631 = vmatpush.bf16.msra.mxu0 %v393
    %632 = vmatpush.bf16.msra.mxu0 %v389
    %633 = vmatpush.bf16.msra.mxu0 %v385
    %634 = vmatpush.bf16.msra.mxu0 %v381
    %635 = vmatmul.bf16.gmra.mxu0 %v600
    %v636 = vpop.f32.mrf.mxu0
    %v637 = vadd.f32 0.0, %v636
    %v638 = vpop.f32.mrf.mxu0
    %639 = vdwg.mxu0
    %640 = vmatpush.bf16.msra.mxu0 %v410
    %641 = vmatpush.bf16.msra.mxu0 %v406
    %642 = vmatpush.bf16.msra.mxu0 %v402
    %643 = vmatpush.bf16.msra.mxu0 %v398
    %644 = vmatpush.bf16.msra.mxu0 %v394
    %645 = vmatpush.bf16.msra.mxu0 %v390
    %646 = vmatpush.bf16.msra.mxu0 %v386
    %647 = vmatpush.bf16.msra.mxu0 %v382
    %648 = vmatmul.bf16.gmra.mxu0 %v600
    %v649 = vpop.f32.mrf.mxu0
    %v650 = vadd.f32 0.0, %v649
    %v651 = vpop.f32.mrf.mxu0
    %652 = vdwg.mxu0
    %v653 = vadd.f32 %v596, %v611
    %v654 = vadd.f32 %v597, %v624
    %v655 = vadd.f32 %v598, %v637
    %v656 = vadd.f32 %v599, %v650
    %v657 = vmul.f32 %v653, 0.5
    %v658 = vtanh.pop %v657
    %v659 = vmul.f32 %v658, 0.5
    %v660 = vadd.f32 %v659, 0.5
    %v661 = vmul.f32 %v654, 0.5
    %v662 = vtanh.pop %v661
    %v663 = vmul.f32 %v662, 0.5
    %v664 = vadd.f32 %v663, 0.5
    %v665 = vtanh.pop %v655
    %v666 = vmul.f32 %v656, 0.5
    %v667 = vtanh.pop %v666
    %v668 = vmul.f32 %v667, 0.5
    %v669 = vadd.f32 %v668, 0.5
    %v670 = vmul.f32 %v664, %v593
    %v671 = vmul.f32 %v660, %v665
    %v672 = vadd.f32 %v670, %v671
    %v673 = vtanh.pop %v672
    %v674 = vmul.f32 %v669, %v673
    %v675 = vld [vmem:[#allocation2 + $0x60] sm:$0xff]
    %v676 = vld [vmem:[#allocation2 + $0x68] sm:$0xff]
    %v677 = vld [vmem:[#allocation2 + $0x70] sm:$0xff]
    %v678 = vld [vmem:[#allocation2 + $0x78] sm:$0xff]
    %v679 = vpack.c.bf16 %v674, %v674
    %680 = vmatpush.bf16.msra.mxu0 %v407
    %681 = vmatpush.bf16.msra.mxu0 %v403
    %682 = vmatpush.bf16.msra.mxu0 %v399
    %683 = vmatpush.bf16.msra.mxu0 %v395
    %684 = vmatpush.bf16.msra.mxu0 %v391
    %685 = vmatpush.bf16.msra.mxu0 %v387
    %686 = vmatpush.bf16.msra.mxu0 %v383
    %687 = vmatpush.bf16.msra.mxu0 %v379
    %688 = vmatmul.bf16.gmra.mxu0 %v679
    %v689 = vpop.f32.mrf.mxu0
    %v690 = vadd.f32 0.0, %v689
    %v691 = vpop.f32.mrf.mxu0
    %692 = vdwg.mxu0
    %693 = vmatpush.bf16.msra.mxu0 %v408
    %694 = vmatpush.bf16.msra.mxu0 %v404
    %695 = vmatpush.bf16.msra.mxu0 %v400
    %696 = vmatpush.bf16.msra.mxu0 %v396
    %697 = vmatpush.bf16.msra.mxu0 %v392
    %698 = vmatpush.bf16.msra.mxu0 %v388
    %699 = vmatpush.bf16.msra.mxu0 %v384
    %700 = vmatpush.bf16.msra.mxu0 %v380
    %701 = vmatmul.bf16.gmra.mxu0 %v679
    %v702 = vpop.f32.mrf.mxu0
    %v703 = vadd.f32 0.0, %v702
    %v704 = vpop.f32.mrf.mxu0
    %705 = vdwg.mxu0
    %706 = vmatpush.bf16.msra.mxu0 %v409
    %707 = vmatpush.bf16.msra.mxu0 %v405
    %708 = vmatpush.bf16.msra.mxu0 %v401
    %709 = vmatpush.bf16.msra.mxu0 %v397
    %710 = vmatpush.bf16.msra.mxu0 %v393
    %711 = vmatpush.bf16.msra.mxu0 %v389
    %712 = vmatpush.bf16.msra.mxu0 %v385
    %713 = vmatpush.bf16.msra.mxu0 %v381
    %714 = vmatmul.bf16.gmra.mxu0 %v679
    %v715 = vpop.f32.mrf.mxu0
    %v716 = vadd.f32 0.0, %v715
    %v717 = vpop.f32.mrf.mxu0
    %718 = vdwg.mxu0
    %719 = vmatpush.bf16.msra.mxu0 %v410
    %720 = vmatpush.bf16.msra.mxu0 %v406
    %721 = vmatpush.bf16.msra.mxu0 %v402
    %722 = vmatpush.bf16.msra.mxu0 %v398
    %723 = vmatpush.bf16.msra.mxu0 %v394
    %724 = vmatpush.bf16.msra.mxu0 %v390
    %725 = vmatpush.bf16.msra.mxu0 %v386
    %726 = vmatpush.bf16.msra.mxu0 %v382
    %727 = vmatmul.bf16.gmra.mxu0 %v679
    %v728 = vpop.f32.mrf.mxu0
    %v729 = vadd.f32 0.0, %v728
    %v730 = vpop.f32.mrf.mxu0
    %731 = vdwg.mxu0
    %v732 = vadd.f32 %v675, %v690
    %v733 = vadd.f32 %v676, %v703
    %v734 = vadd.f32 %v677, %v716
    %v735 = vadd.f32 %v678, %v729
    %v736 = vmul.f32 %v732, 0.5
    %v737 = vtanh.pop %v736
    %v738 = vmul.f32 %v737, 0.5
    %v739 = vadd.f32 %v738, 0.5
    %v740 = vmul.f32 %v733, 0.5
    %v741 = vtanh.pop %v740
    %v742 = vmul.f32 %v741, 0.5
    %v743 = vadd.f32 %v742, 0.5
    %v744 = vtanh.pop %v734
    %v745 = vmul.f32 %v735, 0.5
    %v746 = vtanh.pop %v745
    %v747 = vmul.f32 %v746, 0.5
    %v748 = vadd.f32 %v747, 0.5
    %v749 = vmul.f32 %v743, %v672
    %v750 = vmul.f32 %v739, %v744
    %v751 = vadd.f32 %v749, %v750
    %v752 = vtanh.pop %v751
    %v753 = vmul.f32 %v748, %v752
    %v754 = vld [vmem:[#allocation2 + $0x80] sm:$0xff]
    %v755 = vld [vmem:[#allocation2 + $0x88] sm:$0xff]
    %v756 = vld [vmem:[#allocation2 + $0x90] sm:$0xff]
    %v757 = vld [vmem:[#allocation2 + $0x98] sm:$0xff]
    %v758 = vpack.c.bf16 %v753, %v753
    %759 = vmatpush.bf16.msra.mxu0 %v407
    %760 = vmatpush.bf16.msra.mxu0 %v403
    %761 = vmatpush.bf16.msra.mxu0 %v399
    %762 = vmatpush.bf16.msra.mxu0 %v395
    %763 = vmatpush.bf16.msra.mxu0 %v391
    %764 = vmatpush.bf16.msra.mxu0 %v387
    %765 = vmatpush.bf16.msra.mxu0 %v383
    %766 = vmatpush.bf16.msra.mxu0 %v379
    %767 = vmatmul.bf16.gmra.mxu0 %v758
    %v768 = vpop.f32.mrf.mxu0
    %v769 = vadd.f32 0.0, %v768
    %v770 = vpop.f32.mrf.mxu0
    %771 = vdwg.mxu0
    %772 = vmatpush.bf16.msra.mxu0 %v408
    %773 = vmatpush.bf16.msra.mxu0 %v404
    %774 = vmatpush.bf16.msra.mxu0 %v400
    %775 = vmatpush.bf16.msra.mxu0 %v396
    %776 = vmatpush.bf16.msra.mxu0 %v392
    %777 = vmatpush.bf16.msra.mxu0 %v388
    %778 = vmatpush.bf16.msra.mxu0 %v384
    %779 = vmatpush.bf16.msra.mxu0 %v380
    %780 = vmatmul.bf16.gmra.mxu0 %v758
    %v781 = vpop.f32.mrf.mxu0
    %v782 = vadd.f32 0.0, %v781
    %v783 = vpop.f32.mrf.mxu0
    %784 = vdwg.mxu0
    %785 = vmatpush.bf16.msra.mxu0 %v409
    %786 = vmatpush.bf16.msra.mxu0 %v405
    %787 = vmatpush.bf16.msra.mxu0 %v401
    %788 = vmatpush.bf16.msra.mxu0 %v397
    %789 = vmatpush.bf16.msra.mxu0 %v393
    %790 = vmatpush.bf16.msra.mxu0 %v389
    %791 = vmatpush.bf16.msra.mxu0 %v385
    %792 = vmatpush.bf16.msra.mxu0 %v381
    %793 = vmatmul.bf16.gmra.mxu0 %v758
    %v794 = vpop.f32.mrf.mxu0
    %v795 = vadd.f32 0.0, %v794
    %v796 = vpop.f32.mrf.mxu0
    %797 = vdwg.mxu0
    %798 = vmatpush.bf16.msra.mxu0 %v410
    %799 = vmatpush.bf16.msra.mxu0 %v406
    %800 = vmatpush.bf16.msra.mxu0 %v402
    %801 = vmatpush.bf16.msra.mxu0 %v398
    %802 = vmatpush.bf16.msra.mxu0 %v394
    %803 = vmatpush.bf16.msra.mxu0 %v390
    %804 = vmatpush.bf16.msra.mxu0 %v386
    %805 = vmatpush.bf16.msra.mxu0 %v382
    %806 = vmatmul.bf16.gmra.mxu0 %v758
    %v807 = vpop.f32.mrf.mxu0
    %v808 = vadd.f32 0.0, %v807
    %v809 = vpop.f32.mrf.mxu0
    %810 = vdwg.mxu0
    %v811 = vadd.f32 %v754, %v769
    %v812 = vadd.f32 %v755, %v782
    %v813 = vadd.f32 %v756, %v795
    %v814 = vadd.f32 %v757, %v808
    %v815 = vmul.f32 %v811, 0.5
    %v816 = vtanh.pop %v815
    %v817 = vmul.f32 %v816, 0.5
    %v818 = vadd.f32 %v817, 0.5
    %v819 = vmul.f32 %v812, 0.5
    %v820 = vtanh.pop %v819
    %v821 = vmul.f32 %v820, 0.5
    %v822 = vadd.f32 %v821, 0.5
    %v823 = vtanh.pop %v813
    %v824 = vmul.f32 %v814, 0.5
    %v825 = vtanh.pop %v824
    %v826 = vmul.f32 %v825, 0.5
    %v827 = vadd.f32 %v826, 0.5
    %v828 = vmul.f32 %v822, %v751
    %v829 = vmul.f32 %v818, %v823
    %v830 = vadd.f32 %v828, %v829
    %v831 = vtanh.pop %v830
    %v832 = vmul.f32 %v827, %v831
    %v833 = vld [vmem:[#allocation2 + $0xa0] sm:$0xff]
    %v834 = vld [vmem:[#allocation2 + $0xa8] sm:$0xff]
    %v835 = vld [vmem:[#allocation2 + $0xb0] sm:$0xff]
    %v836 = vld [vmem:[#allocation2 + $0xb8] sm:$0xff]
    %v837 = vpack.c.bf16 %v832, %v832
    %838 = vmatpush.bf16.msra.mxu0 %v407
    %839 = vmatpush.bf16.msra.mxu0 %v403
    %840 = vmatpush.bf16.msra.mxu0 %v399
    %841 = vmatpush.bf16.msra.mxu0 %v395
    %842 = vmatpush.bf16.msra.mxu0 %v391
    %843 = vmatpush.bf16.msra.mxu0 %v387
    %844 = vmatpush.bf16.msra.mxu0 %v383
    %845 = vmatpush.bf16.msra.mxu0 %v379
    %846 = vmatmul.bf16.gmra.mxu0 %v837
    %v847 = vpop.f32.mrf.mxu0
    %v848 = vadd.f32 0.0, %v847
    %v849 = vpop.f32.mrf.mxu0
    %850 = vdwg.mxu0
    %851 = vmatpush.bf16.msra.mxu0 %v408
    %852 = vmatpush.bf16.msra.mxu0 %v404
    %853 = vmatpush.bf16.msra.mxu0 %v400
    %854 = vmatpush.bf16.msra.mxu0 %v396
    %855 = vmatpush.bf16.msra.mxu0 %v392
    %856 = vmatpush.bf16.msra.mxu0 %v388
    %857 = vmatpush.bf16.msra.mxu0 %v384
    %858 = vmatpush.bf16.msra.mxu0 %v380
    %859 = vmatmul.bf16.gmra.mxu0 %v837
    %v860 = vpop.f32.mrf.mxu0
    %v861 = vadd.f32 0.0, %v860
    %v862 = vpop.f32.mrf.mxu0
    %863 = vdwg.mxu0
    %864 = vmatpush.bf16.msra.mxu0 %v409
    %865 = vmatpush.bf16.msra.mxu0 %v405
    %866 = vmatpush.bf16.msra.mxu0 %v401
    %867 = vmatpush.bf16.msra.mxu0 %v397
    %868 = vmatpush.bf16.msra.mxu0 %v393
    %869 = vmatpush.bf16.msra.mxu0 %v389
    %870 = vmatpush.bf16.msra.mxu0 %v385
    %871 = vmatpush.bf16.msra.mxu0 %v381
    %872 = vmatmul.bf16.gmra.mxu0 %v837
    %v873 = vpop.f32.mrf.mxu0
    %v874 = vadd.f32 0.0, %v873
    %v875 = vpop.f32.mrf.mxu0
    %876 = vdwg.mxu0
    %877 = vmatpush.bf16.msra.mxu0 %v410
    %878 = vmatpush.bf16.msra.mxu0 %v406
    %879 = vmatpush.bf16.msra.mxu0 %v402
    %880 = vmatpush.bf16.msra.mxu0 %v398
    %881 = vmatpush.bf16.msra.mxu0 %v394
    %882 = vmatpush.bf16.msra.mxu0 %v390
    %883 = vmatpush.bf16.msra.mxu0 %v386
    %884 = vmatpush.bf16.msra.mxu0 %v382
    %885 = vmatmul.bf16.gmra.mxu0 %v837
    %v886 = vpop.f32.mrf.mxu0
    %v887 = vadd.f32 0.0, %v886
    %v888 = vpop.f32.mrf.mxu0
    %889 = vdwg.mxu0
    %v890 = vadd.f32 %v833, %v848
    %v891 = vadd.f32 %v834, %v861
    %v892 = vadd.f32 %v835, %v874
    %v893 = vadd.f32 %v836, %v887
    %v894 = vmul.f32 %v890, 0.5
    %v895 = vtanh.pop %v894
    %v896 = vmul.f32 %v895, 0.5
    %v897 = vadd.f32 %v896, 0.5
    %v898 = vmul.f32 %v891, 0.5
    %v899 = vtanh.pop %v898
    %v900 = vmul.f32 %v899, 0.5
    %v901 = vadd.f32 %v900, 0.5
    %v902 = vtanh.pop %v892
    %v903 = vmul.f32 %v893, 0.5
    %v904 = vtanh.pop %v903
    %v905 = vmul.f32 %v904, 0.5
    %v906 = vadd.f32 %v905, 0.5
    %v907 = vmul.f32 %v901, %v830
    %v908 = vmul.f32 %v897, %v902
    %v909 = vadd.f32 %v907, %v908
    %v910 = vtanh.pop %v909
    %v911 = vmul.f32 %v906, %v910
    %v912 = vld [vmem:[#allocation2 + $0xc0] sm:$0xff]
    %v913 = vld [vmem:[#allocation2 + $0xc8] sm:$0xff]
    %v914 = vld [vmem:[#allocation2 + $0xd0] sm:$0xff]
    %v915 = vld [vmem:[#allocation2 + $0xd8] sm:$0xff]
    %v916 = vpack.c.bf16 %v911, %v911
    %917 = vmatpush.bf16.msra.mxu0 %v407
    %918 = vmatpush.bf16.msra.mxu0 %v403
    %919 = vmatpush.bf16.msra.mxu0 %v399
    %920 = vmatpush.bf16.msra.mxu0 %v395
    %921 = vmatpush.bf16.msra.mxu0 %v391
    %922 = vmatpush.bf16.msra.mxu0 %v387
    %923 = vmatpush.bf16.msra.mxu0 %v383
    %924 = vmatpush.bf16.msra.mxu0 %v379
    %925 = vmatmul.bf16.gmra.mxu0 %v916
    %v926 = vpop.f32.mrf.mxu0
    %v927 = vadd.f32 0.0, %v926
    %v928 = vpop.f32.mrf.mxu0
    %929 = vdwg.mxu0
    %930 = vmatpush.bf16.msra.mxu0 %v408
    %931 = vmatpush.bf16.msra.mxu0 %v404
    %932 = vmatpush.bf16.msra.mxu0 %v400
    %933 = vmatpush.bf16.msra.mxu0 %v396
    %934 = vmatpush.bf16.msra.mxu0 %v392
    %935 = vmatpush.bf16.msra.mxu0 %v388
    %936 = vmatpush.bf16.msra.mxu0 %v384
    %937 = vmatpush.bf16.msra.mxu0 %v380
    %938 = vmatmul.bf16.gmra.mxu0 %v916
    %v939 = vpop.f32.mrf.mxu0
    %v940 = vadd.f32 0.0, %v939
    %v941 = vpop.f32.mrf.mxu0
    %942 = vdwg.mxu0
    %943 = vmatpush.bf16.msra.mxu0 %v409
    %944 = vmatpush.bf16.msra.mxu0 %v405
    %945 = vmatpush.bf16.msra.mxu0 %v401
    %946 = vmatpush.bf16.msra.mxu0 %v397
    %947 = vmatpush.bf16.msra.mxu0 %v393
    %948 = vmatpush.bf16.msra.mxu0 %v389
    %949 = vmatpush.bf16.msra.mxu0 %v385
    %950 = vmatpush.bf16.msra.mxu0 %v381
    %951 = vmatmul.bf16.gmra.mxu0 %v916
    %v952 = vpop.f32.mrf.mxu0
    %v953 = vadd.f32 0.0, %v952
    %v954 = vpop.f32.mrf.mxu0
    %955 = vdwg.mxu0
    %956 = vmatpush.bf16.msra.mxu0 %v410
    %957 = vmatpush.bf16.msra.mxu0 %v406
    %958 = vmatpush.bf16.msra.mxu0 %v402
    %959 = vmatpush.bf16.msra.mxu0 %v398
    %960 = vmatpush.bf16.msra.mxu0 %v394
    %961 = vmatpush.bf16.msra.mxu0 %v390
    %962 = vmatpush.bf16.msra.mxu0 %v386
    %963 = vmatpush.bf16.msra.mxu0 %v382
    %964 = vmatmul.bf16.gmra.mxu0 %v916
    %v965 = vpop.f32.mrf.mxu0
    %v966 = vadd.f32 0.0, %v965
    %v967 = vpop.f32.mrf.mxu0
    %968 = vdwg.mxu0
    %v969 = vadd.f32 %v912, %v927
    %v970 = vadd.f32 %v913, %v940
    %v971 = vadd.f32 %v914, %v953
    %v972 = vadd.f32 %v915, %v966
    %v973 = vmul.f32 %v969, 0.5
    %v974 = vtanh.pop %v973
    %v975 = vmul.f32 %v974, 0.5
    %v976 = vadd.f32 %v975, 0.5
    %v977 = vmul.f32 %v970, 0.5
    %v978 = vtanh.pop %v977
    %v979 = vmul.f32 %v978, 0.5
    %v980 = vadd.f32 %v979, 0.5
    %v981 = vtanh.pop %v971
    %v982 = vmul.f32 %v972, 0.5
    %v983 = vtanh.pop %v982
    %v984 = vmul.f32 %v983, 0.5
    %v985 = vadd.f32 %v984, 0.5
    %v986 = vmul.f32 %v980, %v909
    %v987 = vmul.f32 %v976, %v981
    %v988 = vadd.f32 %v986, %v987
    %v989 = vtanh.pop %v988
    %v990 = vmul.f32 %v985, %v989
    %v991 = vld [vmem:[#allocation2 + $0xe0] sm:$0xff]
    %v992 = vld [vmem:[#allocation2 + $0xe8] sm:$0xff]
    %v993 = vld [vmem:[#allocation2 + $0xf0] sm:$0xff]
    %v994 = vld [vmem:[#allocation2 + $0xf8] sm:$0xff]
    %v995 = vpack.c.bf16 %v990, %v990
    %996 = vmatpush.bf16.msra.mxu0 %v407
    %997 = vmatpush.bf16.msra.mxu0 %v403
    %998 = vmatpush.bf16.msra.mxu0 %v399
    %999 = vmatpush.bf16.msra.mxu0 %v395
    %1000 = vmatpush.bf16.msra.mxu0 %v391
    %1001 = vmatpush.bf16.msra.mxu0 %v387
    %1002 = vmatpush.bf16.msra.mxu0 %v383
    %1003 = vmatpush.bf16.msra.mxu0 %v379
    %1004 = vmatmul.bf16.gmra.mxu0 %v995
    %v1005 = vpop.f32.mrf.mxu0
    %v1006 = vadd.f32 0.0, %v1005
    %v1007 = vpop.f32.mrf.mxu0
    %1008 = vdwg.mxu0
    %1009 = vmatpush.bf16.msra.mxu0 %v408
    %1010 = vmatpush.bf16.msra.mxu0 %v404
    %1011 = vmatpush.bf16.msra.mxu0 %v400
    %1012 = vmatpush.bf16.msra.mxu0 %v396
    %1013 = vmatpush.bf16.msra.mxu0 %v392
    %1014 = vmatpush.bf16.msra.mxu0 %v388
    %1015 = vmatpush.bf16.msra.mxu0 %v384
    %1016 = vmatpush.bf16.msra.mxu0 %v380
    %1017 = vmatmul.bf16.gmra.mxu0 %v995
    %v1018 = vpop.f32.mrf.mxu0
    %v1019 = vadd.f32 0.0, %v1018
    %v1020 = vpop.f32.mrf.mxu0
    %1021 = vdwg.mxu0
    %1022 = vmatpush.bf16.msra.mxu0 %v409
    %1023 = vmatpush.bf16.msra.mxu0 %v405
    %1024 = vmatpush.bf16.msra.mxu0 %v401
    %1025 = vmatpush.bf16.msra.mxu0 %v397
    %1026 = vmatpush.bf16.msra.mxu0 %v393
    %1027 = vmatpush.bf16.msra.mxu0 %v389
    %1028 = vmatpush.bf16.msra.mxu0 %v385
    %1029 = vmatpush.bf16.msra.mxu0 %v381
    %1030 = vmatmul.bf16.gmra.mxu0 %v995
    %v1031 = vpop.f32.mrf.mxu0
    %v1032 = vadd.f32 0.0, %v1031
    %v1033 = vpop.f32.mrf.mxu0
    %1034 = vdwg.mxu0
    %1035 = vmatpush.bf16.msra.mxu0 %v410
    %1036 = vmatpush.bf16.msra.mxu0 %v406
    %1037 = vmatpush.bf16.msra.mxu0 %v402
    %1038 = vmatpush.bf16.msra.mxu0 %v398
    %1039 = vmatpush.bf16.msra.mxu0 %v394
    %1040 = vmatpush.bf16.msra.mxu0 %v390
    %1041 = vmatpush.bf16.msra.mxu0 %v386
    %1042 = vmatpush.bf16.msra.mxu0 %v382
    %1043 = vmatmul.bf16.gmra.mxu0 %v995
    %v1044 = vpop.f32.mrf.mxu0
    %v1045 = vadd.f32 0.0, %v1044
    %v1046 = vpop.f32.mrf.mxu0
    %1047 = vdwg.mxu0
    %v1048 = vadd.f32 %v991, %v1006
    %v1049 = vadd.f32 %v992, %v1019
    %v1050 = vadd.f32 %v993, %v1032
    %v1051 = vadd.f32 %v994, %v1045
    %v1052 = vmul.f32 %v1048, 0.5
    %v1053 = vtanh.pop %v1052
    %v1054 = vmul.f32 %v1053, 0.5
    %v1055 = vadd.f32 %v1054, 0.5
    %v1056 = vmul.f32 %v1049, 0.5
    %v1057 = vtanh.pop %v1056
    %v1058 = vmul.f32 %v1057, 0.5
    %v1059 = vadd.f32 %v1058, 0.5
    %v1060 = vtanh.pop %v1050
    %v1061 = vmul.f32 %v1051, 0.5
    %v1062 = vtanh.pop %v1061
    %v1063 = vmul.f32 %v1062, 0.5
    %v1064 = vadd.f32 %v1063, 0.5
    %v1065 = vmul.f32 %v1059, %v988
    %v1066 = vmul.f32 %v1055, %v1060
    %v1067 = vadd.f32 %v1065, %v1066
    %v1068 = vtanh.pop %v1067
    %v1069 = vmul.f32 %v1064, %v1068
    %v1070 = vld [vmem:[%s4] sm:$0xff]
    %v1071 = vld [vmem:[%s4 + $0x8] sm:$0xff]
    %v1072 = vld [vmem:[%s4 + $0x10] sm:$0xff]
    %v1073 = vld [vmem:[%s4 + $0x18] sm:$0xff]
    %v1074 = vld [vmem:[%s4 + $0x20] sm:$0xff]
    %v1075 = vld [vmem:[%s4 + $0x28] sm:$0xff]
    %v1076 = vld [vmem:[%s4 + $0x30] sm:$0xff]
    %v1077 = vld [vmem:[%s4 + $0x38] sm:$0xff]
    %v1078 = vld [vmem:[%s4 + $0x40] sm:$0xff]
    %v1079 = vld [vmem:[%s4 + $0x48] sm:$0xff]
    %v1080 = vld [vmem:[%s4 + $0x50] sm:$0xff]
    %v1081 = vld [vmem:[%s4 + $0x58] sm:$0xff]
    %v1082 = vld [vmem:[%s4 + $0x60] sm:$0xff]
    %v1083 = vld [vmem:[%s4 + $0x68] sm:$0xff]
    %v1084 = vld [vmem:[%s4 + $0x70] sm:$0xff]
    %v1085 = vld [vmem:[%s4 + $0x78] sm:$0xff]
    %v1086 = vld [vmem:[%s5] sm:$0x1]
    %v1088 = vperm.slane %v1086, 0
    %1090 = vmatpush.msra.mxu0 %v1085
    %1091 = vmatpush.msra.mxu0 %v1084
    %1092 = vmatpush.msra.mxu0 %v1083
    %1093 = vmatpush.msra.mxu0 %v1082
    %1094 = vmatpush.msra.mxu0 %v1081
    %1095 = vmatpush.msra.mxu0 %v1080
    %1096 = vmatpush.msra.mxu0 %v1079
    %1097 = vmatpush.msra.mxu0 %v1078
    %1098 = vmatpush.msra.mxu0 %v1077
    %1099 = vmatpush.msra.mxu0 %v1076
    %1100 = vmatpush.msra.mxu0 %v1075
    %1101 = vmatpush.msra.mxu0 %v1074
    %1102 = vmatpush.msra.mxu0 %v1073
    %1103 = vmatpush.msra.mxu0 %v1072
    %1104 = vmatpush.msra.mxu0 %v1071
    %1105 = vmatpush.msra.mxu0 %v1070
    %1106 = vmatmul.f32.gmra.mxu0 %v1069
    %v1107 = vpop.f32.mrf.mxu0
    %v1108 = vadd.f32 %v1088, %v1107
    %1109 = vdwg.mxu0
    %vm1110 = vcmask 31744
    %1111 = vst.msk [vmem:[%s6] sm:$0xff] %vm1110, %v1108
    // Predicated region
    $region30: #{tpu_custom_call.1} parent=1 // pred_check
      _
    $region31: #{tpu_custom_call.1} parent=1 // pred_check_branch
      %1113 = sbr.rel (0) target = $region33
    $region32: #{tpu_custom_call.1} parent=1 // pred_region
      _
    $region33: #{tpu_custom_call.1} parent=1 // pred_fallthru
      _
    // Predicated region
    $region34: #{tpu_custom_call.1} parent=1 // pred_check
      _
    $region35: #{tpu_custom_call.1} parent=1 // pred_check_branch
      %1115 = sbr.rel (0) target = $region37
    $region36: #{tpu_custom_call.1} parent=1 // pred_region
      _
    $region37: #{tpu_custom_call.1} parent=1 // pred_fallthru
      _
    %1116 = vsyncpa [#allocation4], 1

</llo_original>
